<compile_context>
chip_gen: v7x
topology: tpu7x:2x2x1
jax: 0.10.0
libtpu: 0.0.40
codegen_flags: <defaults>
</compile_context>

<pallas_src>
import functools

import jax
import jax.numpy as jnp
from jax.experimental import pallas as pl
from jax.experimental.pallas import tpu as pltpu


def _round_up(a, m):
    return -(-a // m) * m


def _elu(x):
    # ELU(alpha=1). One transcendental per element (EUP-friendly); the
    # minimum() guard keeps the unused branch from overflowing.
    xn = jnp.minimum(x, 0.0)
    return jnp.where(x > 0.0, x, jnp.exp(xn) - 1.0)


def _fused_mlp_kernel(x_ref, w_in_ref, w_hid_ref, w_out_ref, b_ref, o_ref, *,
                      n_hidden_layers, gh, go):
    # Feature-major layout: activations are (features, batch-lanes).
    x = x_ref[0]                                                   # (gi, tn)

    # Input layer: one block-diagonal matmul for the whole group.
    h = jnp.dot(w_in_ref[0], x, preferred_element_type=jnp.float32)
    h = _elu(h + b_ref[0, 0][:gh, :])                              # (gh, tn)

    # Hidden layers (static trip count -> unrolled at trace time).
    for l in range(n_hidden_layers):
        h = jnp.dot(w_hid_ref[0, l], h, preferred_element_type=jnp.float32)
        h = _elu(h + b_ref[0, 1 + l][:gh, :])

    # Output layer: (go, tn) is lane-dense -> plain unmasked vst, no padding.
    o = jnp.dot(w_out_ref[0], h, preferred_element_type=jnp.float32)
    o_ref[0] = (o + b_ref[0, n_hidden_layers + 1][:go, :]).astype(o_ref.dtype)


def _block_diag(w):
    """[Sg, a, b] -> block-diagonal [Sg*a, Sg*b]."""
    sg, a, b = w.shape
    eye = jnp.eye(sg, dtype=w.dtype)
    return jnp.einsum('jk,jpq->jpkq', eye, w).reshape(sg * a, sg * b)


def _default_groups(S, H):
    """Pick #groups so the fused hidden width matches the MXU tile width."""
    target = 256                      # v6e / v7x: 256-wide MXU
    try:
        kind = jax.devices()[0].device_kind.lower()
        if "v5" in kind and ("lite" in kind or "5e" in kind):
            target = 128              # v5e: 128-wide MXU tiles
    except Exception:
        pass
    g = 1
    while g < S and (S // g) * H > target:
        g += 1
        while S % g != 0:
            g += 1
    return g


def mdof_stoch_pinn_forward(x, params, *, n_layers, groups=None, tn_cap=512):
    """Forward for the stack of seq_len independent MLPs.

    x: [S, N, n_input] float32 (the per-net time inputs, stacked).
    Returns stacked outputs [S, N, n_output]; out[s] is exactly the s-th
    element of the PyTorch module's forward() tuple.
    """
    w_in, b_in, w_hid, b_hid, w_out, b_out = params
    S, N, n_input = x.shape
    H = w_in.shape[-1]
    O = w_out.shape[-1]
    Lh = n_layers - 1
    assert Lh >= 1, "n_layers must be >= 2"

    G = _default_groups(S, H) if groups is None else groups
    assert S % G == 0
    Sg = S // G
    gi, gh, go = Sg * n_input, Sg * H, Sg * O
    bw = _round_up(max(gh, go), 8)        # packed bias column height

    # ---- N tiling: hard cap; never one giant tile -------------------------
    if N <= tn_cap:
        tn, n_pad = N, N                  # single lane-tile (full-dim block)
    else:
        tn = tn_cap                       # multiple of 128 -> lane-dense blocks
        n_pad = _round_up(N, tn)

    # ---- one-time layout plumbing (plain XLA, outside the kernel) ----------
    # x: batch on lanes -> (G, gi, n_pad)
    xg = x.reshape(G, Sg, N, n_input).transpose(0, 1, 3, 2).reshape(G, gi, N)
    if n_pad != N:
        xg = jnp.pad(xg, ((0, 0), (0, 0), (0, n_pad - N)))

    # Transposed (feature-major) block-diagonal weights.
    w_in_bd = jax.vmap(_block_diag)(
        w_in.reshape(G, Sg, n_input, H).transpose(0, 1, 3, 2))           # (G, gh, gi)
    w_hid_bd = jax.vmap(jax.vmap(_block_diag))(
        w_hid.reshape(G, Sg, Lh, H, H).transpose(0, 2, 1, 4, 3))         # (G, Lh, gh, gh)
    w_out_bd = jax.vmap(_block_diag)(
        w_out.reshape(G, Sg, H, O).transpose(0, 1, 3, 2))                # (G, go, gh)

    def pad_last(a, width):
        return jnp.pad(a, ((0, 0),) * (a.ndim - 1) + ((0, width - a.shape[-1]),))

    b_in_r = pad_last(b_in.reshape(G, gh), bw)[:, None, :]               # (G, 1, bw)
    b_hid_r = pad_last(
        b_hid.reshape(G, Sg, Lh, H).transpose(0, 2, 1, 3).reshape(G, Lh, gh),
        bw)                                                              # (G, Lh, bw)
    b_out_r = pad_last(b_out.reshape(G, go), bw)[:, None, :]             # (G, 1, bw)
    # Bias columns: (G, n_layers+1, bw, 1) -> broadcast along lanes in-kernel.
    biases = jnp.concatenate([b_in_r, b_hid_r, b_out_r], axis=1)[..., None]

    kernel = functools.partial(_fused_mlp_kernel, n_hidden_layers=Lh,
                               gh=gh, go=go)

    out = pl.pallas_call(
        kernel,
        out_shape=jax.ShapeDtypeStruct((G, go, n_pad), jnp.float32),
        grid_spec=pltpu.PrefetchScalarGridSpec(
            num_scalar_prefetch=0,
            grid=(G, n_pad // tn),
            in_specs=[
                pl.BlockSpec((1, gi, tn), lambda g, nb: (g, 0, nb)),
                pl.BlockSpec((1, gh, gi), lambda g, nb: (g, 0, 0)),
                pl.BlockSpec((1, Lh, gh, gh), lambda g, nb: (g, 0, 0, 0)),
                pl.BlockSpec((1, go, gh), lambda g, nb: (g, 0, 0)),
                pl.BlockSpec((1, n_layers + 1, bw, 1),
                             lambda g, nb: (g, 0, 0, 0)),
            ],
            out_specs=pl.BlockSpec((1, go, tn), lambda g, nb: (g, 0, nb)),
        ),
        compiler_params=pltpu.CompilerParams(
            dimension_semantics=("parallel", "parallel")),
    )(xg, w_in_bd, w_hid_bd, w_out_bd, biases)

    # Un-pad and un-fuse: (G, go, n_pad) -> (S, N, n_output).
    out = out[:, :, :N].reshape(G, Sg, O, N).transpose(0, 1, 3, 2)
    return out.reshape(S, N, O)


def init_params(key, *, seq_len, n_input, n_hidden, n_output, n_layers):
    """Deterministic synthetic parameters (shapes match the nn.Module)."""
    ks = jax.random.split(key, 6)
    scale = 0.1
    w_in = scale * jax.random.normal(ks[0], (seq_len, n_input, n_hidden), jnp.float32)
    b_in = scale * jax.random.normal(ks[1], (seq_len, 1, n_hidden), jnp.float32)
    w_hid = scale * jax.random.normal(
        ks[2], (seq_len, n_layers - 1, n_hidden, n_hidden), jnp.float32)
    b_hid = scale * jax.random.normal(
        ks[3], (seq_len, n_layers - 1, 1, n_hidden), jnp.float32)
    w_out = scale * jax.random.normal(ks[4], (seq_len, n_hidden, n_output), jnp.float32)
    b_out = scale * jax.random.normal(ks[5], (seq_len, 1, n_output), jnp.float32)
    return (w_in, b_in, w_hid, b_hid, w_out, b_out)


def reference_forward(x, params, *, n_layers):
    """Pure-JAX reference of the PyTorch forward (stacked [S, N, n_output])."""
    w_in, b_in, w_hid, b_hid, w_out, b_out = params

    def elu(v):
        return jnp.where(v > 0, v, jnp.expm1(v))

    outs = []
    for s in range(x.shape[0]):
        h = elu(x[s] @ w_in[s] + b_in[s])
        for l in range(n_layers - 1):
            h = elu(h @ w_hid[s, l] + b_hid[s, l])
        outs.append(h @ w_out[s] + b_out[s])
    return jnp.stack(outs, axis=0)


if __name__ == "__main__":
    # Small config consistent with the module:
    #   n_input=1 (time), n_dof=2 -> n_output = 2*n_dof = 4,
    #   n_hidden=32, n_layers=3, seq_len=8, batch N=16.
    seq_len, N = 8, 16
    n_input, n_hidden, n_output, n_layers = 1, 32, 4, 3

    key = jax.random.PRNGKey(0)
    k_x, k_p, k_x2 = jax.random.split(key, 3)
    # x corresponds to the tuple of per-net time inputs, stacked: [S, N, n_input]
    x = jax.random.normal(k_x, (seq_len, N, n_input), jnp.float32)
    params = init_params(k_p, seq_len=seq_len, n_input=n_input,
                         n_hidden=n_hidden, n_output=n_output, n_layers=n_layers)

    y = jax.block_until_ready(mdof_stoch_pinn_forward(x, params, n_layers=n_layers))
    y_ref = reference_forward(x, params, n_layers=n_layers)
    assert y.shape == (seq_len, N, n_output)
    assert jnp.allclose(y, y_ref, atol=1e-4, rtol=1e-4), "mismatch vs reference"

    # Exercise the N-tiling + padding path (N > tn cap, not a multiple of it).
    N2 = 640
    x2 = jax.random.normal(k_x2, (seq_len, N2, n_input), jnp.float32)
    y2 = jax.block_until_ready(mdof_stoch_pinn_forward(x2, params, n_layers=n_layers))
    y2_ref = reference_forward(x2, params, n_layers=n_layers)
    assert y2.shape == (seq_len, N2, n_output)
    assert jnp.allclose(y2, y2_ref, atol=1e-4, rtol=1e-4), "mismatch vs reference (tiled)"

    # TODO(synk): loss_func / predict involve autograd-through-input (dz/dt),
    # sorting, and physics residual assembly; only the forward pass is kernelized.
    print("KERNEL_OK")
</pallas_src>

<mosaic_0001>
module attributes {stable_mosaic.version = 11 : i64} {
  func.func @_fused_mlp_kernel(%arg0: i32, %arg1: i32, %arg2: memref<1x8x16xf32, #tpu.memory_space<vmem>>, %arg3: memref<1x256x8xf32, #tpu.memory_space<vmem>>, %arg4: memref<1x2x256x256xf32, #tpu.memory_space<vmem>>, %arg5: memref<1x32x256xf32, #tpu.memory_space<vmem>>, %arg6: memref<1x4x256x1xf32, #tpu.memory_space<vmem>>, %arg7: memref<1x32x16xf32, #tpu.memory_space<vmem>>) attributes {dimension_semantics = [#tpu.dimension_semantics<parallel>, #tpu.dimension_semantics<parallel>], iteration_bounds = array<i64: 1, 1>, scalar_prefetch = 0 : i64, scratch_operands = 0 : i64, tpu.core_type = #tpu.core_type<tc>, window_params = [{transform_indices = @transform_0, window_bounds = array<i64: 1, 8, 16>}, {transform_indices = @transform_1, window_bounds = array<i64: 1, 256, 8>}, {transform_indices = @transform_2, window_bounds = array<i64: 1, 2, 256, 256>}, {transform_indices = @transform_3, window_bounds = array<i64: 1, 32, 256>}, {transform_indices = @transform_4, window_bounds = array<i64: 1, 4, 256, 1>}, {transform_indices = @transform_5, window_bounds = array<i64: 1, 32, 16>}]} {
    %c0 = arith.constant 0 : index
    %c0_0 = arith.constant 0 : index
    %c0_1 = arith.constant 0 : index
    %0 = vector.load %arg2[%c0, %c0_0, %c0_1] : memref<1x8x16xf32, #tpu.memory_space<vmem>>, vector<1x8x16xf32>
    %1 = vector.shape_cast %0 : vector<1x8x16xf32> to vector<8x16xf32>
    %c0_2 = arith.constant 0 : index
    %c0_3 = arith.constant 0 : index
    %c0_4 = arith.constant 0 : index
    %2 = vector.load %arg3[%c0_2, %c0_3, %c0_4] : memref<1x256x8xf32, #tpu.memory_space<vmem>>, vector<1x256x8xf32>
    %3 = vector.shape_cast %2 : vector<1x256x8xf32> to vector<256x8xf32>
    %cst = arith.constant dense<0.000000e+00> : vector<256x16xf32>
    %4 = tpu.matmul %3, %1, %cst {dimension_numbers = #tpu.dot_dimension_numbers<[1], [0], [0], [1], [0, 0, 1, 1], [], []>} : vector<256x8xf32>, vector<8x16xf32>, vector<256x16xf32> -> vector<256x16xf32>
    %c0_5 = arith.constant 0 : index
    %c0_6 = arith.constant 0 : index
    %c0_7 = arith.constant 0 : index
    %c0_8 = arith.constant 0 : index
    %5 = vector.load %arg6[%c0_5, %c0_6, %c0_7, %c0_8] : memref<1x4x256x1xf32, #tpu.memory_space<vmem>>, vector<1x1x256x1xf32>
    %6 = vector.shape_cast %5 : vector<1x1x256x1xf32> to vector<256x1xf32>
    %7 = vector.broadcast %6 : vector<256x1xf32> to vector<256x16xf32>
    %8 = arith.addf %4, %7 : vector<256x16xf32>
    %cst_9 = arith.constant 0.000000e+00 : f32
    %9 = vector.broadcast %cst_9 : f32 to vector<256x16xf32>
    %10 = arith.minimumf %8, %9 : vector<256x16xf32>
    %cst_10 = arith.constant 0.000000e+00 : f32
    %11 = vector.broadcast %cst_10 : f32 to vector<256x16xf32>
    %12 = arith.cmpf ogt, %8, %11 : vector<256x16xf32>
    %13 = math.exp %10 : vector<256x16xf32>
    %cst_11 = arith.constant 1.000000e+00 : f32
    %14 = vector.broadcast %cst_11 : f32 to vector<256x16xf32>
    %15 = arith.subf %13, %14 : vector<256x16xf32>
    %16 = arith.select %12, %8, %15 : vector<256x16xi1>, vector<256x16xf32>
    %c0_12 = arith.constant 0 : index
    %c0_13 = arith.constant 0 : index
    %c0_14 = arith.constant 0 : index
    %c0_15 = arith.constant 0 : index
    %17 = vector.load %arg4[%c0_12, %c0_13, %c0_14, %c0_15] : memref<1x2x256x256xf32, #tpu.memory_space<vmem>>, vector<1x1x256x256xf32>
    %18 = vector.shape_cast %17 : vector<1x1x256x256xf32> to vector<256x256xf32>
    %cst_16 = arith.constant dense<0.000000e+00> : vector<256x16xf32>
    %19 = tpu.matmul %18, %16, %cst_16 {dimension_numbers = #tpu.dot_dimension_numbers<[1], [0], [0], [1], [0, 0, 1, 1], [], []>} : vector<256x256xf32>, vector<256x16xf32>, vector<256x16xf32> -> vector<256x16xf32>
    %c0_17 = arith.constant 0 : index
    %c1 = arith.constant 1 : index
    %c0_18 = arith.constant 0 : index
    %c0_19 = arith.constant 0 : index
    %20 = vector.load %arg6[%c0_17, %c1, %c0_18, %c0_19] : memref<1x4x256x1xf32, #tpu.memory_space<vmem>>, vector<1x1x256x1xf32>
    %21 = vector.shape_cast %20 : vector<1x1x256x1xf32> to vector<256x1xf32>
    %22 = vector.broadcast %21 : vector<256x1xf32> to vector<256x16xf32>
    %23 = arith.addf %19, %22 : vector<256x16xf32>
    %cst_20 = arith.constant 0.000000e+00 : f32
    %24 = vector.broadcast %cst_20 : f32 to vector<256x16xf32>
    %25 = arith.minimumf %23, %24 : vector<256x16xf32>
    %cst_21 = arith.constant 0.000000e+00 : f32
    %26 = vector.broadcast %cst_21 : f32 to vector<256x16xf32>
    %27 = arith.cmpf ogt, %23, %26 : vector<256x16xf32>
    %28 = math.exp %25 : vector<256x16xf32>
    %cst_22 = arith.constant 1.000000e+00 : f32
    %29 = vector.broadcast %cst_22 : f32 to vector<256x16xf32>
    %30 = arith.subf %28, %29 : vector<256x16xf32>
    %31 = arith.select %27, %23, %30 : vector<256x16xi1>, vector<256x16xf32>
    %c0_23 = arith.constant 0 : index
    %c1_24 = arith.constant 1 : index
    %c0_25 = arith.constant 0 : index
    %c0_26 = arith.constant 0 : index
    %32 = vector.load %arg4[%c0_23, %c1_24, %c0_25, %c0_26] : memref<1x2x256x256xf32, #tpu.memory_space<vmem>>, vector<1x1x256x256xf32>
    %33 = vector.shape_cast %32 : vector<1x1x256x256xf32> to vector<256x256xf32>
    %cst_27 = arith.constant dense<0.000000e+00> : vector<256x16xf32>
    %34 = tpu.matmul %33, %31, %cst_27 {dimension_numbers = #tpu.dot_dimension_numbers<[1], [0], [0], [1], [0, 0, 1, 1], [], []>} : vector<256x256xf32>, vector<256x16xf32>, vector<256x16xf32> -> vector<256x16xf32>
    %c0_28 = arith.constant 0 : index
    %c2 = arith.constant 2 : index
    %c0_29 = arith.constant 0 : index
    %c0_30 = arith.constant 0 : index
    %35 = vector.load %arg6[%c0_28, %c2, %c0_29, %c0_30] : memref<1x4x256x1xf32, #tpu.memory_space<vmem>>, vector<1x1x256x1xf32>
    %36 = vector.shape_cast %35 : vector<1x1x256x1xf32> to vector<256x1xf32>
    %37 = vector.broadcast %36 : vector<256x1xf32> to vector<256x16xf32>
    %38 = arith.addf %34, %37 : vector<256x16xf32>
    %cst_31 = arith.constant 0.000000e+00 : f32
    %39 = vector.broadcast %cst_31 : f32 to vector<256x16xf32>
    %40 = arith.minimumf %38, %39 : vector<256x16xf32>
    %cst_32 = arith.constant 0.000000e+00 : f32
    %41 = vector.broadcast %cst_32 : f32 to vector<256x16xf32>
    %42 = arith.cmpf ogt, %38, %41 : vector<256x16xf32>
    %43 = math.exp %40 : vector<256x16xf32>
    %cst_33 = arith.constant 1.000000e+00 : f32
    %44 = vector.broadcast %cst_33 : f32 to vector<256x16xf32>
    %45 = arith.subf %43, %44 : vector<256x16xf32>
    %46 = arith.select %42, %38, %45 : vector<256x16xi1>, vector<256x16xf32>
    %c0_34 = arith.constant 0 : index
    %c0_35 = arith.constant 0 : index
    %c0_36 = arith.constant 0 : index
    %47 = vector.load %arg5[%c0_34, %c0_35, %c0_36] : memref<1x32x256xf32, #tpu.memory_space<vmem>>, vector<1x32x256xf32>
    %48 = vector.shape_cast %47 : vector<1x32x256xf32> to vector<32x256xf32>
    %cst_37 = arith.constant dense<0.000000e+00> : vector<32x16xf32>
    %49 = tpu.matmul %48, %46, %cst_37 {dimension_numbers = #tpu.dot_dimension_numbers<[1], [0], [0], [1], [0, 0, 1, 1], [], []>} : vector<32x256xf32>, vector<256x16xf32>, vector<32x16xf32> -> vector<32x16xf32>
    %c0_38 = arith.constant 0 : index
    %c3 = arith.constant 3 : index
    %c0_39 = arith.constant 0 : index
    %c0_40 = arith.constant 0 : index
    %50 = vector.load %arg6[%c0_38, %c3, %c0_39, %c0_40] : memref<1x4x256x1xf32, #tpu.memory_space<vmem>>, vector<1x1x256x1xf32>
    %51 = vector.shape_cast %50 : vector<1x1x256x1xf32> to vector<256x1xf32>
    %52 = vector.extract_strided_slice %51 {offsets = [0, 0], sizes = [32, 1], strides = [1, 1]} : vector<256x1xf32> to vector<32x1xf32>
    %53 = vector.broadcast %52 : vector<32x1xf32> to vector<32x16xf32>
    %54 = arith.addf %49, %53 : vector<32x16xf32>
    %c0_41 = arith.constant 0 : index
    %c0_42 = arith.constant 0 : index
    %c0_43 = arith.constant 0 : index
    %55 = vector.load %arg7[%c0_41, %c0_42, %c0_43] : memref<1x32x16xf32, #tpu.memory_space<vmem>>, vector<1x32x16xf32>
    %56 = vector.shape_cast %55 : vector<1x32x16xf32> to vector<32x16xf32>
    %57 = vector.shape_cast %54 : vector<32x16xf32> to vector<1x32x16xf32>
    tpu.vector_store %arg7[%c0_41, %c0_42, %c0_43], %57 {strides = array<i32>} : memref<1x32x16xf32, #tpu.memory_space<vmem>>, vector<1x32x16xf32>,
    return
  }
  func.func @transform_0(%arg0: i32, %arg1: i32) -> (i32, i32, i32) {
    %c0_i32 = arith.constant 0 : i32
    %c0_i32_0 = arith.constant 0 : i32
    return %arg0, %c0_i32, %arg1 : i32, i32, i32
  }
  func.func @transform_1(%arg0: i32, %arg1: i32) -> (i32, i32, i32) {
    %c0_i32 = arith.constant 0 : i32
    %c0_i32_0 = arith.constant 0 : i32
    %c0_i32_1 = arith.constant 0 : i32
    return %arg0, %c0_i32, %c0_i32_0 : i32, i32, i32
  }
  func.func @transform_2(%arg0: i32, %arg1: i32) -> (i32, i32, i32, i32) {
    %c0_i32 = arith.constant 0 : i32
    %c0_i32_0 = arith.constant 0 : i32
    %c0_i32_1 = arith.constant 0 : i32
    %c0_i32_2 = arith.constant 0 : i32
    return %arg0, %c0_i32, %c0_i32_0, %c0_i32_1 : i32, i32, i32, i32
  }
  func.func @transform_3(%arg0: i32, %arg1: i32) -> (i32, i32, i32) {
    %c0_i32 = arith.constant 0 : i32
    %c0_i32_0 = arith.constant 0 : i32
    %c0_i32_1 = arith.constant 0 : i32
    return %arg0, %c0_i32, %c0_i32_0 : i32, i32, i32
  }
  func.func @transform_4(%arg0: i32, %arg1: i32) -> (i32, i32, i32, i32) {
    %c0_i32 = arith.constant 0 : i32
    %c0_i32_0 = arith.constant 0 : i32
    %c0_i32_1 = arith.constant 0 : i32
    %c0_i32_2 = arith.constant 0 : i32
    return %arg0, %c0_i32, %c0_i32_0, %c0_i32_1 : i32, i32, i32, i32
  }
  func.func @transform_5(%arg0: i32, %arg1: i32) -> (i32, i32, i32) {
    %c0_i32 = arith.constant 0 : i32
    %c0_i32_0 = arith.constant 0 : i32
    return %arg0, %c0_i32, %arg1 : i32, i32, i32
  }
}

</mosaic_0001>

<llo_original>
// kernel: tpu_custom_call.1
$region0: #{tpu_custom_call.1}
  #allocation0 [shape = 'u32[]', space=smem, size = 0x4, offset = 0x4, fixed_abs, tag = 'smem constant byte address 0x4 - core index']
  #allocation1 [shape = 'u32[144,128]{1,0:T(1,128)}', space=vmem, size = 0x12000, scoped, tag = 'internal scratch']
  %s0 = inlined_call_operand.vmem [shape: f32[1,8,16], index: 0, kind: input, shape index: {}]
  %s1 = inlined_call_operand.vmem [shape: f32[1,256,8], index: 1, kind: input, shape index: {}]
  %s2 = inlined_call_operand.vmem [shape: f32[1,2,256,256], index: 2, kind: input, shape index: {}]
  %s3 = inlined_call_operand.vmem [shape: f32[1,32,256], index: 3, kind: input, shape index: {}]
  %s4 = inlined_call_operand.vmem [shape: f32[1,4,256,1], index: 4, kind: input, shape index: {}]
  %s5 = inlined_call_operand.vmem [shape: f32[1,32,16], index: 5, kind: output, shape index: {}]
  %s6 = sld [smem:[#allocation0]]
  $region30: #{tpu_custom_call.1} parent=0
    _
  %s8 = ssub.s32 1, %s6
  %s9 = scalar_select 0, %s8, %s6
  // Predicated region
  $region2: #{tpu_custom_call.1} parent=0 // pred_check
    _
  $region3: #{tpu_custom_call.1} parent=0 // pred_check_branch
    %11 = sbr.rel (0) target = $region5
  $region4: #{tpu_custom_call.1} parent=0 // pred_region
    _
  $region5: #{tpu_custom_call.1} parent=0 // pred_fallthru
    _
  // Predicated region
  $region6: #{tpu_custom_call.1} parent=0 // pred_check
    _
  $region7: #{tpu_custom_call.1} parent=0 // pred_check_branch
    %13 = sbr.rel (0) target = $region9
  $region8: #{tpu_custom_call.1} parent=0 // pred_region
    _
  $region9: #{tpu_custom_call.1} parent=0 // pred_fallthru
    _
  // Predicated region
  $region10: #{tpu_custom_call.1} parent=0 // pred_check
    _
  $region11: #{tpu_custom_call.1} parent=0 // pred_check_branch
    %15 = sbr.rel (0) target = $region13
  $region12: #{tpu_custom_call.1} parent=0 // pred_region
    _
  $region13: #{tpu_custom_call.1} parent=0 // pred_fallthru
    _
  // Predicated region
  $region14: #{tpu_custom_call.1} parent=0 // pred_check
    _
  $region15: #{tpu_custom_call.1} parent=0 // pred_check_branch
    %17 = sbr.rel (0) target = $region17
  $region16: #{tpu_custom_call.1} parent=0 // pred_region
    _
  $region17: #{tpu_custom_call.1} parent=0 // pred_fallthru
    _
  // Predicated region
  $region18: #{tpu_custom_call.1} parent=0 // pred_check
    _
  $region19: #{tpu_custom_call.1} parent=0 // pred_check_branch
    %19 = sbr.rel (0) target = $region21
  $region20: #{tpu_custom_call.1} parent=0 // pred_region
    _
  $region21: #{tpu_custom_call.1} parent=0 // pred_fallthru
    _
  %v20 = vld [vmem:[%s0] sm:$0xff]
  %v21 = vld [vmem:[%s1] sm:$0xff]
  %v22 = vld [vmem:[%s1 + $0x8] sm:$0xff]
  %v23 = vld [vmem:[%s1 + $0x10] sm:$0xff]
  %v24 = vld [vmem:[%s1 + $0x18] sm:$0xff]
  %v25 = vld [vmem:[%s1 + $0x20] sm:$0xff]
  %v26 = vld [vmem:[%s1 + $0x28] sm:$0xff]
  %v27 = vld [vmem:[%s1 + $0x30] sm:$0xff]
  %v28 = vld [vmem:[%s1 + $0x38] sm:$0xff]
  %v29 = vld [vmem:[%s1 + $0x40] sm:$0xff]
  %v30 = vld [vmem:[%s1 + $0x48] sm:$0xff]
  %v31 = vld [vmem:[%s1 + $0x50] sm:$0xff]
  %v32 = vld [vmem:[%s1 + $0x58] sm:$0xff]
  %v33 = vld [vmem:[%s1 + $0x60] sm:$0xff]
  %v34 = vld [vmem:[%s1 + $0x68] sm:$0xff]
  %v35 = vld [vmem:[%s1 + $0x70] sm:$0xff]
  %v36 = vld [vmem:[%s1 + $0x78] sm:$0xff]
  %v37 = vld [vmem:[%s1 + $0x80] sm:$0xff]
  %v38 = vld [vmem:[%s1 + $0x88] sm:$0xff]
  %v39 = vld [vmem:[%s1 + $0x90] sm:$0xff]
  %v40 = vld [vmem:[%s1 + $0x98] sm:$0xff]
  %v41 = vld [vmem:[%s1 + $0xa0] sm:$0xff]
  %v42 = vld [vmem:[%s1 + $0xa8] sm:$0xff]
  %v43 = vld [vmem:[%s1 + $0xb0] sm:$0xff]
  %v44 = vld [vmem:[%s1 + $0xb8] sm:$0xff]
  %v45 = vld [vmem:[%s1 + $0xc0] sm:$0xff]
  %v46 = vld [vmem:[%s1 + $0xc8] sm:$0xff]
  %v47 = vld [vmem:[%s1 + $0xd0] sm:$0xff]
  %v48 = vld [vmem:[%s1 + $0xd8] sm:$0xff]
  %v49 = vld [vmem:[%s1 + $0xe0] sm:$0xff]
  %v50 = vld [vmem:[%s1 + $0xe8] sm:$0xff]
  %v51 = vld [vmem:[%s1 + $0xf0] sm:$0xff]
  %v52 = vld [vmem:[%s1 + $0xf8] sm:$0xff]
  %v53 = vld [vmem:[%s4] sm:$0xff]
  %v54 = vld [vmem:[%s4 + $0x8] sm:$0xff]
  %v55 = vld [vmem:[%s4 + $0x10] sm:$0xff]
  %v56 = vld [vmem:[%s4 + $0x18] sm:$0xff]
  %v57 = vld [vmem:[%s4 + $0x20] sm:$0xff]
  %v58 = vld [vmem:[%s4 + $0x28] sm:$0xff]
  %v59 = vld [vmem:[%s4 + $0x30] sm:$0xff]
  %v60 = vld [vmem:[%s4 + $0x38] sm:$0xff]
  %v61 = vld [vmem:[%s4 + $0x40] sm:$0xff]
  %v62 = vld [vmem:[%s4 + $0x48] sm:$0xff]
  %v63 = vld [vmem:[%s4 + $0x50] sm:$0xff]
  %v64 = vld [vmem:[%s4 + $0x58] sm:$0xff]
  %v65 = vld [vmem:[%s4 + $0x60] sm:$0xff]
  %v66 = vld [vmem:[%s4 + $0x68] sm:$0xff]
  %v67 = vld [vmem:[%s4 + $0x70] sm:$0xff]
  %v68 = vld [vmem:[%s4 + $0x78] sm:$0xff]
  %v69 = vld [vmem:[%s4 + $0x80] sm:$0xff]
  %v70 = vld [vmem:[%s4 + $0x88] sm:$0xff]
  %v71 = vld [vmem:[%s4 + $0x90] sm:$0xff]
  %v72 = vld [vmem:[%s4 + $0x98] sm:$0xff]
  %v73 = vld [vmem:[%s4 + $0xa0] sm:$0xff]
  %v74 = vld [vmem:[%s4 + $0xa8] sm:$0xff]
  %v75 = vld [vmem:[%s4 + $0xb0] sm:$0xff]
  %v76 = vld [vmem:[%s4 + $0xb8] sm:$0xff]
  %v77 = vld [vmem:[%s4 + $0xc0] sm:$0xff]
  %v78 = vld [vmem:[%s4 + $0xc8] sm:$0xff]
  %v79 = vld [vmem:[%s4 + $0xd0] sm:$0xff]
  %v80 = vld [vmem:[%s4 + $0xd8] sm:$0xff]
  %v81 = vld [vmem:[%s4 + $0xe0] sm:$0xff]
  %v82 = vld [vmem:[%s4 + $0xe8] sm:$0xff]
  %v83 = vld [vmem:[%s4 + $0xf0] sm:$0xff]
  %v84 = vld [vmem:[%s4 + $0xf8] sm:$0xff]
  %86 = vset.pattern.permute.xlu0 0
  %87 = vperm.xlu0 %86, %v53
  %v88 = vpop.permute.xlu0 %87
  %91 = vset.pattern.permute.xlu0 0
  %92 = vperm.xlu0 %91, %v54
  %v93 = vpop.permute.xlu0 %92
  %96 = vset.pattern.permute.xlu0 0
  %97 = vperm.xlu0 %96, %v55
  %v98 = vpop.permute.xlu0 %97
  %101 = vset.pattern.permute.xlu0 0
  %102 = vperm.xlu0 %101, %v56
  %v103 = vpop.permute.xlu0 %102
  %106 = vset.pattern.permute.xlu0 0
  %107 = vperm.xlu0 %106, %v57
  %v108 = vpop.permute.xlu0 %107
  %111 = vset.pattern.permute.xlu0 0
  %112 = vperm.xlu0 %111, %v58
  %v113 = vpop.permute.xlu0 %112
  %116 = vset.pattern.permute.xlu0 0
  %117 = vperm.xlu0 %116, %v59
  %v118 = vpop.permute.xlu0 %117
  %121 = vset.pattern.permute.xlu0 0
  %122 = vperm.xlu0 %121, %v60
  %v123 = vpop.permute.xlu0 %122
  %126 = vset.pattern.permute.xlu0 0
  %127 = vperm.xlu0 %126, %v61
  %v128 = vpop.permute.xlu0 %127
  %131 = vset.pattern.permute.xlu0 0
  %132 = vperm.xlu0 %131, %v62
  %v133 = vpop.permute.xlu0 %132
  %136 = vset.pattern.permute.xlu0 0
  %137 = vperm.xlu0 %136, %v63
  %v138 = vpop.permute.xlu0 %137
  %141 = vset.pattern.permute.xlu0 0
  %142 = vperm.xlu0 %141, %v64
  %v143 = vpop.permute.xlu0 %142
  %146 = vset.pattern.permute.xlu0 0
  %147 = vperm.xlu0 %146, %v65
  %v148 = vpop.permute.xlu0 %147
  %151 = vset.pattern.permute.xlu0 0
  %152 = vperm.xlu0 %151, %v66
  %v153 = vpop.permute.xlu0 %152
  %156 = vset.pattern.permute.xlu0 0
  %157 = vperm.xlu0 %156, %v67
  %v158 = vpop.permute.xlu0 %157
  %161 = vset.pattern.permute.xlu0 0
  %162 = vperm.xlu0 %161, %v68
  %v163 = vpop.permute.xlu0 %162
  %166 = vset.pattern.permute.xlu0 0
  %167 = vperm.xlu0 %166, %v69
  %v168 = vpop.permute.xlu0 %167
  %171 = vset.pattern.permute.xlu0 0
  %172 = vperm.xlu0 %171, %v70
  %v173 = vpop.permute.xlu0 %172
  %176 = vset.pattern.permute.xlu0 0
  %177 = vperm.xlu0 %176, %v71
  %v178 = vpop.permute.xlu0 %177
  %181 = vset.pattern.permute.xlu0 0
  %182 = vperm.xlu0 %181, %v72
  %v183 = vpop.permute.xlu0 %182
  %186 = vset.pattern.permute.xlu0 0
  %187 = vperm.xlu0 %186, %v73
  %v188 = vpop.permute.xlu0 %187
  %191 = vset.pattern.permute.xlu0 0
  %192 = vperm.xlu0 %191, %v74
  %v193 = vpop.permute.xlu0 %192
  %196 = vset.pattern.permute.xlu0 0
  %197 = vperm.xlu0 %196, %v75
  %v198 = vpop.permute.xlu0 %197
  %201 = vset.pattern.permute.xlu0 0
  %202 = vperm.xlu0 %201, %v76
  %v203 = vpop.permute.xlu0 %202
  %206 = vset.pattern.permute.xlu0 0
  %207 = vperm.xlu0 %206, %v77
  %v208 = vpop.permute.xlu0 %207
  %211 = vset.pattern.permute.xlu0 0
  %212 = vperm.xlu0 %211, %v78
  %v213 = vpop.permute.xlu0 %212
  %216 = vset.pattern.permute.xlu0 0
  %217 = vperm.xlu0 %216, %v79
  %v218 = vpop.permute.xlu0 %217
  %221 = vset.pattern.permute.xlu0 0
  %222 = vperm.xlu0 %221, %v80
  %v223 = vpop.permute.xlu0 %222
  %226 = vset.pattern.permute.xlu0 0
  %227 = vperm.xlu0 %226, %v81
  %v228 = vpop.permute.xlu0 %227
  %231 = vset.pattern.permute.xlu0 0
  %232 = vperm.xlu0 %231, %v82
  %v233 = vpop.permute.xlu0 %232
  %236 = vset.pattern.permute.xlu0 0
  %237 = vperm.xlu0 %236, %v83
  %v238 = vpop.permute.xlu0 %237
  %241 = vset.pattern.permute.xlu0 0
  %242 = vperm.xlu0 %241, %v84
  %v243 = vpop.permute.xlu0 %242
  %vm245 = vcmask 64512
  %v247 = vsel %vm245, %v21, 0
  %v250 = vsel %vm245, %v22, 0
  %v253 = vsel %vm245, %v23, 0
  %v256 = vsel %vm245, %v24, 0
  %v259 = vsel %vm245, %v25, 0
  %v262 = vsel %vm245, %v26, 0
  %v265 = vsel %vm245, %v27, 0
  %v268 = vsel %vm245, %v28, 0
  %v271 = vsel %vm245, %v29, 0
  %v274 = vsel %vm245, %v30, 0
  %v277 = vsel %vm245, %v31, 0
  %v280 = vsel %vm245, %v32, 0
  %v283 = vsel %vm245, %v33, 0
  %v286 = vsel %vm245, %v34, 0
  %v289 = vsel %vm245, %v35, 0
  %v292 = vsel %vm245, %v36, 0
  %v295 = vsel %vm245, %v37, 0
  %v298 = vsel %vm245, %v38, 0
  %v301 = vsel %vm245, %v39, 0
  %v304 = vsel %vm245, %v40, 0
  %v307 = vsel %vm245, %v41, 0
  %v310 = vsel %vm245, %v42, 0
  %v313 = vsel %vm245, %v43, 0
  %v316 = vsel %vm245, %v44, 0
  %v319 = vsel %vm245, %v45, 0
  %v322 = vsel %vm245, %v46, 0
  %v325 = vsel %vm245, %v47, 0
  %v328 = vsel %vm245, %v48, 0
  %v331 = vsel %vm245, %v49, 0
  %v334 = vsel %vm245, %v50, 0
  %v337 = vsel %vm245, %v51, 0
  %v340 = vsel %vm245, %v52, 0
  %342 = vmatprep.subr.mxu0 0.0
  %343 = vmatpush1.msra.mxu0 %v20
  %344 = vmatprep.subr.mxu0 0.0
  %345 = vmatpush1.msra.mxu0 0.0
  %346 = vmatprep.subr.mxu0 0.0
  %347 = vmatpush1.msra.mxu0 0.0
  %348 = vmatprep.subr.mxu0 0.0
  %349 = vmatpush1.msra.mxu0 0.0
  %350 = vmatprep.subr.mxu0 0.0
  %351 = vmatpush1.msra.mxu0 0.0
  %352 = vmatprep.subr.mxu0 0.0
  %353 = vmatpush1.msra.mxu0 0.0
  %354 = vmatprep.subr.mxu0 0.0
  %355 = vmatpush1.msra.mxu0 0.0
  %356 = vmatprep.subr.mxu0 0.0
  %357 = vmatpush1.msra.mxu0 0.0
  %358 = vmatprep.subr.mxu0 0.0
  %359 = vmatpush1.msra.mxu0 0.0
  %360 = vmatprep.subr.mxu0 0.0
  %361 = vmatpush1.msra.mxu0 0.0
  %362 = vmatprep.subr.mxu0 0.0
  %363 = vmatpush1.msra.mxu0 0.0
  %364 = vmatprep.subr.mxu0 0.0
  %365 = vmatpush1.msra.mxu0 0.0
  %366 = vmatprep.subr.mxu0 0.0
  %367 = vmatpush1.msra.mxu0 0.0
  %368 = vmatprep.subr.mxu0 0.0
  %369 = vmatpush1.msra.mxu0 0.0
  %370 = vmatprep.subr.mxu0 0.0
  %371 = vmatpush1.msra.mxu0 0.0
  %372 = vmatprep.subr.mxu0 0.0
  %373 = vmatpush1.msra.mxu0 0.0
  %374 = vmatprep.subr.mxu0 0.0
  %375 = vmatpush1.msra.mxu0 0.0
  %376 = vmatprep.subr.mxu0 0.0
  %377 = vmatpush1.msra.mxu0 0.0
  %378 = vmatprep.subr.mxu0 0.0
  %379 = vmatpush1.msra.mxu0 0.0
  %380 = vmatprep.subr.mxu0 0.0
  %381 = vmatpush1.msra.mxu0 0.0
  %382 = vmatprep.subr.mxu0 0.0
  %383 = vmatpush1.msra.mxu0 0.0
  %384 = vmatprep.subr.mxu0 0.0
  %385 = vmatpush1.msra.mxu0 0.0
  %386 = vmatprep.subr.mxu0 0.0
  %387 = vmatpush1.msra.mxu0 0.0
  %388 = vmatprep.subr.mxu0 0.0
  %389 = vmatpush1.msra.mxu0 0.0
  %390 = vmatprep.subr.mxu0 0.0
  %391 = vmatpush1.msra.mxu0 0.0
  %392 = vmatprep.subr.mxu0 0.0
  %393 = vmatpush1.msra.mxu0 0.0
  %394 = vmatprep.subr.mxu0 0.0
  %395 = vmatpush1.msra.mxu0 0.0
  %396 = vmatprep.subr.mxu0 0.0
  %397 = vmatpush1.msra.mxu0 0.0
  %398 = vmatprep.subr.mxu0 0.0
  %399 = vmatpush1.msra.mxu0 0.0
  %400 = vmatprep.subr.mxu0 0.0
  %401 = vmatpush1.msra.mxu0 0.0
  %402 = vmatprep.subr.mxu0 0.0
  %403 = vmatpush1.msra.mxu0 0.0
  %404 = vmatprep.subr.mxu0 0.0
  %405 = vmatpush1.msra.mxu0 0.0
  %406 = vmatprep.mubr.f32.mxu0 0.0
  %407 = vmatmul.mubr.f32.gmra.mrb[0].mxu0 %v247
  %v408 = vpop.f32.mrb[0].mxu0
  %v409 = vadd.f32 %v88, %v408
  %v410 = vpop.f32.mrb[0].mxu0
  %411 = vmatprep.mubr.f32.mxu0 0.0
  %412 = vmatmul.mubr.f32.gmra.mrb[0].mxu0 %v250
  %v413 = vpop.f32.mrb[0].mxu0
  %v414 = vadd.f32 %v93, %v413
  %v415 = vpop.f32.mrb[0].mxu0
  %416 = vmatprep.mubr.f32.mxu0 0.0
  %417 = vmatmul.mubr.f32.gmra.mrb[0].mxu0 %v253
  %v418 = vpop.f32.mrb[0].mxu0
  %v419 = vadd.f32 %v98, %v418
  %v420 = vpop.f32.mrb[0].mxu0
  %421 = vmatprep.mubr.f32.mxu0 0.0
  %422 = vmatmul.mubr.f32.gmra.mrb[0].mxu0 %v256
  %v423 = vpop.f32.mrb[0].mxu0
  %v424 = vadd.f32 %v103, %v423
  %v425 = vpop.f32.mrb[0].mxu0
  %426 = vmatprep.mubr.f32.mxu0 0.0
  %427 = vmatmul.mubr.f32.gmra.mrb[0].mxu0 %v259
  %v428 = vpop.f32.mrb[0].mxu0
  %v429 = vadd.f32 %v108, %v428
  %v430 = vpop.f32.mrb[0].mxu0
  %431 = vmatprep.mubr.f32.mxu0 0.0
  %432 = vmatmul.mubr.f32.gmra.mrb[0].mxu0 %v262
  %v433 = vpop.f32.mrb[0].mxu0
  %v434 = vadd.f32 %v113, %v433
  %v435 = vpop.f32.mrb[0].mxu0
  %436 = vmatprep.mubr.f32.mxu0 0.0
  %437 = vmatmul.mubr.f32.gmra.mrb[0].mxu0 %v265
  %v438 = vpop.f32.mrb[0].mxu0
  %v439 = vadd.f32 %v118, %v438
  %v440 = vpop.f32.mrb[0].mxu0
  %441 = vmatprep.mubr.f32.mxu0 0.0
  %442 = vmatmul.mubr.f32.gmra.mrb[0].mxu0 %v268
  %v443 = vpop.f32.mrb[0].mxu0
  %v444 = vadd.f32 %v123, %v443
  %v445 = vpop.f32.mrb[0].mxu0
  %446 = vmatprep.mubr.f32.mxu0 0.0
  %447 = vmatmul.mubr.f32.gmra.mrb[0].mxu0 %v271
  %v448 = vpop.f32.mrb[0].mxu0
  %v449 = vadd.f32 %v128, %v448
  %v450 = vpop.f32.mrb[0].mxu0
  %451 = vmatprep.mubr.f32.mxu0 0.0
  %452 = vmatmul.mubr.f32.gmra.mrb[0].mxu0 %v274
  %v453 = vpop.f32.mrb[0].mxu0
  %v454 = vadd.f32 %v133, %v453
  %v455 = vpop.f32.mrb[0].mxu0
  %456 = vmatprep.mubr.f32.mxu0 0.0
  %457 = vmatmul.mubr.f32.gmra.mrb[0].mxu0 %v277
  %v458 = vpop.f32.mrb[0].mxu0
  %v459 = vadd.f32 %v138, %v458
  %v460 = vpop.f32.mrb[0].mxu0
  %461 = vmatprep.mubr.f32.mxu0 0.0
  %462 = vmatmul.mubr.f32.gmra.mrb[0].mxu0 %v280
  %v463 = vpop.f32.mrb[0].mxu0
  %v464 = vadd.f32 %v143, %v463
  %v465 = vpop.f32.mrb[0].mxu0
  %466 = vmatprep.mubr.f32.mxu0 0.0
  %467 = vmatmul.mubr.f32.gmra.mrb[0].mxu0 %v283
  %v468 = vpop.f32.mrb[0].mxu0
  %v469 = vadd.f32 %v148, %v468
  %v470 = vpop.f32.mrb[0].mxu0
  %471 = vmatprep.mubr.f32.mxu0 0.0
  %472 = vmatmul.mubr.f32.gmra.mrb[0].mxu0 %v286
  %v473 = vpop.f32.mrb[0].mxu0
  %v474 = vadd.f32 %v153, %v473
  %v475 = vpop.f32.mrb[0].mxu0
  %476 = vmatprep.mubr.f32.mxu0 0.0
  %477 = vmatmul.mubr.f32.gmra.mrb[0].mxu0 %v289
  %v478 = vpop.f32.mrb[0].mxu0
  %v479 = vadd.f32 %v158, %v478
  %v480 = vpop.f32.mrb[0].mxu0
  %481 = vmatprep.mubr.f32.mxu0 0.0
  %482 = vmatmul.mubr.f32.gmra.mrb[0].mxu0 %v292
  %v483 = vpop.f32.mrb[0].mxu0
  %v484 = vadd.f32 %v163, %v483
  %v485 = vpop.f32.mrb[0].mxu0
  %486 = vmatprep.mubr.f32.mxu0 0.0
  %487 = vmatmul.mubr.f32.gmra.mrb[0].mxu0 %v295
  %v488 = vpop.f32.mrb[0].mxu0
  %v489 = vadd.f32 %v168, %v488
  %v490 = vpop.f32.mrb[0].mxu0
  %491 = vmatprep.mubr.f32.mxu0 0.0
  %492 = vmatmul.mubr.f32.gmra.mrb[0].mxu0 %v298
  %v493 = vpop.f32.mrb[0].mxu0
  %v494 = vadd.f32 %v173, %v493
  %v495 = vpop.f32.mrb[0].mxu0
  %496 = vmatprep.mubr.f32.mxu0 0.0
  %497 = vmatmul.mubr.f32.gmra.mrb[0].mxu0 %v301
  %v498 = vpop.f32.mrb[0].mxu0
  %v499 = vadd.f32 %v178, %v498
  %v500 = vpop.f32.mrb[0].mxu0
  %501 = vmatprep.mubr.f32.mxu0 0.0
  %502 = vmatmul.mubr.f32.gmra.mrb[0].mxu0 %v304
  %v503 = vpop.f32.mrb[0].mxu0
  %v504 = vadd.f32 %v183, %v503
  %v505 = vpop.f32.mrb[0].mxu0
  %506 = vmatprep.mubr.f32.mxu0 0.0
  %507 = vmatmul.mubr.f32.gmra.mrb[0].mxu0 %v307
  %v508 = vpop.f32.mrb[0].mxu0
  %v509 = vadd.f32 %v188, %v508
  %v510 = vpop.f32.mrb[0].mxu0
  %511 = vmatprep.mubr.f32.mxu0 0.0
  %512 = vmatmul.mubr.f32.gmra.mrb[0].mxu0 %v310
  %v513 = vpop.f32.mrb[0].mxu0
  %v514 = vadd.f32 %v193, %v513
  %v515 = vpop.f32.mrb[0].mxu0
  %516 = vmatprep.mubr.f32.mxu0 0.0
  %517 = vmatmul.mubr.f32.gmra.mrb[0].mxu0 %v313
  %v518 = vpop.f32.mrb[0].mxu0
  %v519 = vadd.f32 %v198, %v518
  %v520 = vpop.f32.mrb[0].mxu0
  %521 = vmatprep.mubr.f32.mxu0 0.0
  %522 = vmatmul.mubr.f32.gmra.mrb[0].mxu0 %v316
  %v523 = vpop.f32.mrb[0].mxu0
  %v524 = vadd.f32 %v203, %v523
  %v525 = vpop.f32.mrb[0].mxu0
  %526 = vmatprep.mubr.f32.mxu0 0.0
  %527 = vmatmul.mubr.f32.gmra.mrb[0].mxu0 %v319
  %v528 = vpop.f32.mrb[0].mxu0
  %v529 = vadd.f32 %v208, %v528
  %v530 = vpop.f32.mrb[0].mxu0
  %531 = vmatprep.mubr.f32.mxu0 0.0
  %532 = vmatmul.mubr.f32.gmra.mrb[0].mxu0 %v322
  %v533 = vpop.f32.mrb[0].mxu0
  %v534 = vadd.f32 %v213, %v533
  %v535 = vpop.f32.mrb[0].mxu0
  %536 = vmatprep.mubr.f32.mxu0 0.0
  %537 = vmatmul.mubr.f32.gmra.mrb[0].mxu0 %v325
  %v538 = vpop.f32.mrb[0].mxu0
  %v539 = vadd.f32 %v218, %v538
  %v540 = vpop.f32.mrb[0].mxu0
  %541 = vmatprep.mubr.f32.mxu0 0.0
  %542 = vmatmul.mubr.f32.gmra.mrb[0].mxu0 %v328
  %v543 = vpop.f32.mrb[0].mxu0
  %v544 = vadd.f32 %v223, %v543
  %v545 = vpop.f32.mrb[0].mxu0
  %546 = vmatprep.mubr.f32.mxu0 0.0
  %547 = vmatmul.mubr.f32.gmra.mrb[0].mxu0 %v331
  %v548 = vpop.f32.mrb[0].mxu0
  %v549 = vadd.f32 %v228, %v548
  %v550 = vpop.f32.mrb[0].mxu0
  %551 = vmatprep.mubr.f32.mxu0 0.0
  %552 = vmatmul.mubr.f32.gmra.mrb[0].mxu0 %v334
  %v553 = vpop.f32.mrb[0].mxu0
  %v554 = vadd.f32 %v233, %v553
  %v555 = vpop.f32.mrb[0].mxu0
  %556 = vmatprep.mubr.f32.mxu0 0.0
  %557 = vmatmul.mubr.f32.gmra.mrb[0].mxu0 %v337
  %v558 = vpop.f32.mrb[0].mxu0
  %v559 = vadd.f32 %v238, %v558
  %v560 = vpop.f32.mrb[0].mxu0
  %561 = vmatprep.mubr.f32.mxu0 0.0
  %562 = vmatmul.mubr.f32.gmra.mrb[0].mxu0 %v340
  %v563 = vpop.f32.mrb[0].mxu0
  %v564 = vadd.f32 %v243, %v563
  %v565 = vpop.f32.mrb[0].mxu0
  %566 = vdwg.mxu0
  %v567 = vmin.f32 %v409, 0.0
  %v568 = vmin.f32 %v414, 0.0
  %v569 = vmin.f32 %v419, 0.0
  %v570 = vmin.f32 %v424, 0.0
  %v571 = vmin.f32 %v429, 0.0
  %v572 = vmin.f32 %v434, 0.0
  %v573 = vmin.f32 %v439, 0.0
  %v574 = vmin.f32 %v444, 0.0
  %v575 = vmin.f32 %v449, 0.0
  %v576 = vmin.f32 %v454, 0.0
  %v577 = vmin.f32 %v459, 0.0
  %v578 = vmin.f32 %v464, 0.0
  %v579 = vmin.f32 %v469, 0.0
  %v580 = vmin.f32 %v474, 0.0
  %v581 = vmin.f32 %v479, 0.0
  %v582 = vmin.f32 %v484, 0.0
  %v583 = vmin.f32 %v489, 0.0
  %v584 = vmin.f32 %v494, 0.0
  %v585 = vmin.f32 %v499, 0.0
  %v586 = vmin.f32 %v504, 0.0
  %v587 = vmin.f32 %v509, 0.0
  %v588 = vmin.f32 %v514, 0.0
  %v589 = vmin.f32 %v519, 0.0
  %v590 = vmin.f32 %v524, 0.0
  %v591 = vmin.f32 %v529, 0.0
  %v592 = vmin.f32 %v534, 0.0
  %v593 = vmin.f32 %v539, 0.0
  %v594 = vmin.f32 %v544, 0.0
  %v595 = vmin.f32 %v549, 0.0
  %v596 = vmin.f32 %v554, 0.0
  %v597 = vmin.f32 %v559, 0.0
  %v598 = vmin.f32 %v564, 0.0
  %vm599 = vcmp.gt.f32.partialorder %v409, 0.0
  %vm600 = vcmp.gt.f32.partialorder %v414, 0.0
  %vm601 = vcmp.gt.f32.partialorder %v419, 0.0
  %vm602 = vcmp.gt.f32.partialorder %v424, 0.0
  %vm603 = vcmp.gt.f32.partialorder %v429, 0.0
  %vm604 = vcmp.gt.f32.partialorder %v434, 0.0
  %vm605 = vcmp.gt.f32.partialorder %v439, 0.0
  %vm606 = vcmp.gt.f32.partialorder %v444, 0.0
  %vm607 = vcmp.gt.f32.partialorder %v449, 0.0
  %vm608 = vcmp.gt.f32.partialorder %v454, 0.0
  %vm609 = vcmp.gt.f32.partialorder %v459, 0.0
  %vm610 = vcmp.gt.f32.partialorder %v464, 0.0
  %vm611 = vcmp.gt.f32.partialorder %v469, 0.0
  %vm612 = vcmp.gt.f32.partialorder %v474, 0.0
  %vm613 = vcmp.gt.f32.partialorder %v479, 0.0
  %vm614 = vcmp.gt.f32.partialorder %v484, 0.0
  %vm615 = vcmp.gt.f32.partialorder %v489, 0.0
  %vm616 = vcmp.gt.f32.partialorder %v494, 0.0
  %vm617 = vcmp.gt.f32.partialorder %v499, 0.0
  %vm618 = vcmp.gt.f32.partialorder %v504, 0.0
  %vm619 = vcmp.gt.f32.partialorder %v509, 0.0
  %vm620 = vcmp.gt.f32.partialorder %v514, 0.0
  %vm621 = vcmp.gt.f32.partialorder %v519, 0.0
  %vm622 = vcmp.gt.f32.partialorder %v524, 0.0
  %vm623 = vcmp.gt.f32.partialorder %v529, 0.0
  %vm624 = vcmp.gt.f32.partialorder %v534, 0.0
  %vm625 = vcmp.gt.f32.partialorder %v539, 0.0
  %vm626 = vcmp.gt.f32.partialorder %v544, 0.0
  %vm627 = vcmp.gt.f32.partialorder %v549, 0.0
  %vm628 = vcmp.gt.f32.partialorder %v554, 0.0
  %vm629 = vcmp.gt.f32.partialorder %v559, 0.0
  %vm630 = vcmp.gt.f32.partialorder %v564, 0.0
  %v631 = vmul.f32 %v567, 1.442695
  %v632 = vpow.pop %v631
  %v633 = vmul.f32 %v568, 1.442695
  %v634 = vpow.pop %v633
  %v635 = vmul.f32 %v569, 1.442695
  %v636 = vpow.pop %v635
  %v637 = vmul.f32 %v570, 1.442695
  %v638 = vpow.pop %v637
  %v639 = vmul.f32 %v571, 1.442695
  %v640 = vpow.pop %v639
  %v641 = vmul.f32 %v572, 1.442695
  %v642 = vpow.pop %v641
  %v643 = vmul.f32 %v573, 1.442695
  %v644 = vpow.pop %v643
  %v645 = vmul.f32 %v574, 1.442695
  %v646 = vpow.pop %v645
  %v647 = vmul.f32 %v575, 1.442695
  %v648 = vpow.pop %v647
  %v649 = vmul.f32 %v576, 1.442695
  %v650 = vpow.pop %v649
  %v651 = vmul.f32 %v577, 1.442695
  %v652 = vpow.pop %v651
  %v653 = vmul.f32 %v578, 1.442695
  %v654 = vpow.pop %v653
  %v655 = vmul.f32 %v579, 1.442695
  %v656 = vpow.pop %v655
  %v657 = vmul.f32 %v580, 1.442695
  %v658 = vpow.pop %v657
  %v659 = vmul.f32 %v581, 1.442695
  %v660 = vpow.pop %v659
  %v661 = vmul.f32 %v582, 1.442695
  %v662 = vpow.pop %v661
  %v663 = vmul.f32 %v583, 1.442695
  %v664 = vpow.pop %v663
  %v665 = vmul.f32 %v584, 1.442695
  %v666 = vpow.pop %v665
  %v667 = vmul.f32 %v585, 1.442695
  %v668 = vpow.pop %v667
  %v669 = vmul.f32 %v586, 1.442695
  %v670 = vpow.pop %v669
  %v671 = vmul.f32 %v587, 1.442695
  %v672 = vpow.pop %v671
  %v673 = vmul.f32 %v588, 1.442695
  %v674 = vpow.pop %v673
  %v675 = vmul.f32 %v589, 1.442695
  %v676 = vpow.pop %v675
  %v677 = vmul.f32 %v590, 1.442695
  %v678 = vpow.pop %v677
  %v679 = vmul.f32 %v591, 1.442695
  %v680 = vpow.pop %v679
  %v681 = vmul.f32 %v592, 1.442695
  %v682 = vpow.pop %v681
  %v683 = vmul.f32 %v593, 1.442695
  %v684 = vpow.pop %v683
  %v685 = vmul.f32 %v594, 1.442695
  %v686 = vpow.pop %v685
  %v687 = vmul.f32 %v595, 1.442695
  %v688 = vpow.pop %v687
  %v689 = vmul.f32 %v596, 1.442695
  %v690 = vpow.pop %v689
  %v691 = vmul.f32 %v597, 1.442695
  %v692 = vpow.pop %v691
  %v693 = vmul.f32 %v598, 1.442695
  %v694 = vpow.pop %v693
  %v695 = vsub.f32 %v632, 1.0
  %v696 = vsub.f32 %v634, 1.0
  %v697 = vsub.f32 %v636, 1.0
  %v698 = vsub.f32 %v638, 1.0
  %v699 = vsub.f32 %v640, 1.0
  %v700 = vsub.f32 %v642, 1.0
  %v701 = vsub.f32 %v644, 1.0
  %v702 = vsub.f32 %v646, 1.0
  %v703 = vsub.f32 %v648, 1.0
  %v704 = vsub.f32 %v650, 1.0
  %v705 = vsub.f32 %v652, 1.0
  %v706 = vsub.f32 %v654, 1.0
  %v707 = vsub.f32 %v656, 1.0
  %v708 = vsub.f32 %v658, 1.0
  %v709 = vsub.f32 %v660, 1.0
  %v710 = vsub.f32 %v662, 1.0
  %v711 = vsub.f32 %v664, 1.0
  %v712 = vsub.f32 %v666, 1.0
  %v713 = vsub.f32 %v668, 1.0
  %v714 = vsub.f32 %v670, 1.0
  %v715 = vsub.f32 %v672, 1.0
  %v716 = vsub.f32 %v674, 1.0
  %v717 = vsub.f32 %v676, 1.0
  %v718 = vsub.f32 %v678, 1.0
  %v719 = vsub.f32 %v680, 1.0
  %v720 = vsub.f32 %v682, 1.0
  %v721 = vsub.f32 %v684, 1.0
  %v722 = vsub.f32 %v686, 1.0
  %v723 = vsub.f32 %v688, 1.0
  %v724 = vsub.f32 %v690, 1.0
  %v725 = vsub.f32 %v692, 1.0
  %v726 = vsub.f32 %v694, 1.0
  %v727 = vsel %vm599, %v409, %v695
  %v728 = vsel %vm600, %v414, %v696
  %v729 = vsel %vm601, %v419, %v697
  %v730 = vsel %vm602, %v424, %v698
  %v731 = vsel %vm603, %v429, %v699
  %v732 = vsel %vm604, %v434, %v700
  %v733 = vsel %vm605, %v439, %v701
  %v734 = vsel %vm606, %v444, %v702
  %v735 = vsel %vm607, %v449, %v703
  %v736 = vsel %vm608, %v454, %v704
  %v737 = vsel %vm609, %v459, %v705
  %v738 = vsel %vm610, %v464, %v706
  %v739 = vsel %vm611, %v469, %v707
  %v740 = vsel %vm612, %v474, %v708
  %v741 = vsel %vm613, %v479, %v709
  %v742 = vsel %vm614, %v484, %v710
  %v743 = vsel %vm615, %v489, %v711
  %v744 = vsel %vm616, %v494, %v712
  %v745 = vsel %vm617, %v499, %v713
  %v746 = vsel %vm618, %v504, %v714
  %v747 = vsel %vm619, %v509, %v715
  %v748 = vsel %vm620, %v514, %v716
  %v749 = vsel %vm621, %v519, %v717
  %v750 = vsel %vm622, %v524, %v718
  %v751 = vsel %vm623, %v529, %v719
  %v752 = vsel %vm624, %v534, %v720
  %v753 = vsel %vm625, %v539, %v721
  %v754 = vsel %vm626, %v544, %v722
  %v755 = vsel %vm627, %v549, %v723
  %v756 = vsel %vm628, %v554, %v724
  %v757 = vsel %vm629, %v559, %v725
  %v758 = vsel %vm630, %v564, %v726
  %v759 = vld [vmem:[%s2] sm:$0xff]
  %v760 = vld [vmem:[%s2 + $0x8] sm:$0xff]
  %v761 = vld [vmem:[%s2 + $0x10] sm:$0xff]
  %v762 = vld [vmem:[%s2 + $0x18] sm:$0xff]
  %v763 = vld [vmem:[%s2 + $0x20] sm:$0xff]
  %v764 = vld [vmem:[%s2 + $0x28] sm:$0xff]
  %v765 = vld [vmem:[%s2 + $0x30] sm:$0xff]
  %v766 = vld [vmem:[%s2 + $0x38] sm:$0xff]
  %v767 = vld [vmem:[%s2 + $0x40] sm:$0xff]
  %v768 = vld [vmem:[%s2 + $0x48] sm:$0xff]
  %v769 = vld [vmem:[%s2 + $0x50] sm:$0xff]
  %v770 = vld [vmem:[%s2 + $0x58] sm:$0xff]
  %v771 = vld [vmem:[%s2 + $0x60] sm:$0xff]
  %v772 = vld [vmem:[%s2 + $0x68] sm:$0xff]
  %v773 = vld [vmem:[%s2 + $0x70] sm:$0xff]
  %v774 = vld [vmem:[%s2 + $0x78] sm:$0xff]
  %v775 = vld [vmem:[%s2 + $0x80] sm:$0xff]
  %v776 = vld [vmem:[%s2 + $0x88] sm:$0xff]
  %v777 = vld [vmem:[%s2 + $0x90] sm:$0xff]
  %v778 = vld [vmem:[%s2 + $0x98] sm:$0xff]
  %v779 = vld [vmem:[%s2 + $0xa0] sm:$0xff]
  %v780 = vld [vmem:[%s2 + $0xa8] sm:$0xff]
  %v781 = vld [vmem:[%s2 + $0xb0] sm:$0xff]
  %v782 = vld [vmem:[%s2 + $0xb8] sm:$0xff]
  %v783 = vld [vmem:[%s2 + $0xc0] sm:$0xff]
  %v784 = vld [vmem:[%s2 + $0xc8] sm:$0xff]
  %v785 = vld [vmem:[%s2 + $0xd0] sm:$0xff]
  %v786 = vld [vmem:[%s2 + $0xd8] sm:$0xff]
  %v787 = vld [vmem:[%s2 + $0xe0] sm:$0xff]
  %v788 = vld [vmem:[%s2 + $0xe8] sm:$0xff]
  %v789 = vld [vmem:[%s2 + $0xf0] sm:$0xff]
  %v790 = vld [vmem:[%s2 + $0xf8] sm:$0xff]
  %v791 = vld [vmem:[%s2 + $0x100] sm:$0xff]
  %v792 = vld [vmem:[%s2 + $0x108] sm:$0xff]
  %v793 = vld [vmem:[%s2 + $0x110] sm:$0xff]
  %v794 = vld [vmem:[%s2 + $0x118] sm:$0xff]
  %v795 = vld [vmem:[%s2 + $0x120] sm:$0xff]
  %v796 = vld [vmem:[%s2 + $0x128] sm:$0xff]
  %v797 = vld [vmem:[%s2 + $0x130] sm:$0xff]
  %v798 = vld [vmem:[%s2 + $0x138] sm:$0xff]
  %v799 = vld [vmem:[%s2 + $0x140] sm:$0xff]
  %v800 = vld [vmem:[%s2 + $0x148] sm:$0xff]
  %v801 = vld [vmem:[%s2 + $0x150] sm:$0xff]
  %v802 = vld [vmem:[%s2 + $0x158] sm:$0xff]
  %v803 = vld [vmem:[%s2 + $0x160] sm:$0xff]
  %v804 = vld [vmem:[%s2 + $0x168] sm:$0xff]
  %v805 = vld [vmem:[%s2 + $0x170] sm:$0xff]
  %v806 = vld [vmem:[%s2 + $0x178] sm:$0xff]
  %v807 = vld [vmem:[%s2 + $0x180] sm:$0xff]
  %v808 = vld [vmem:[%s2 + $0x188] sm:$0xff]
  %v809 = vld [vmem:[%s2 + $0x190] sm:$0xff]
  %v810 = vld [vmem:[%s2 + $0x198] sm:$0xff]
  %v811 = vld [vmem:[%s2 + $0x1a0] sm:$0xff]
  %v812 = vld [vmem:[%s2 + $0x1a8] sm:$0xff]
  %v813 = vld [vmem:[%s2 + $0x1b0] sm:$0xff]
  %v814 = vld [vmem:[%s2 + $0x1b8] sm:$0xff]
  %v815 = vld [vmem:[%s2 + $0x1c0] sm:$0xff]
  %v816 = vld [vmem:[%s2 + $0x1c8] sm:$0xff]
  %v817 = vld [vmem:[%s2 + $0x1d0] sm:$0xff]
  %v818 = vld [vmem:[%s2 + $0x1d8] sm:$0xff]
  %v819 = vld [vmem:[%s2 + $0x1e0] sm:$0xff]
  %v820 = vld [vmem:[%s2 + $0x1e8] sm:$0xff]
  %v821 = vld [vmem:[%s2 + $0x1f0] sm:$0xff]
  %v822 = vld [vmem:[%s2 + $0x1f8] sm:$0xff]
  %s823 = scalar_lea.vmem %s4, 256
  %v824 = vld [vmem:[%s823] sm:$0xff]
  %v825 = vld [vmem:[%s823 + $0x8] sm:$0xff]
  %v826 = vld [vmem:[%s823 + $0x10] sm:$0xff]
  %v827 = vld [vmem:[%s823 + $0x18] sm:$0xff]
  %v828 = vld [vmem:[%s823 + $0x20] sm:$0xff]
  %v829 = vld [vmem:[%s823 + $0x28] sm:$0xff]
  %v830 = vld [vmem:[%s823 + $0x30] sm:$0xff]
  %v831 = vld [vmem:[%s823 + $0x38] sm:$0xff]
  %v832 = vld [vmem:[%s823 + $0x40] sm:$0xff]
  %v833 = vld [vmem:[%s823 + $0x48] sm:$0xff]
  %v834 = vld [vmem:[%s823 + $0x50] sm:$0xff]
  %v835 = vld [vmem:[%s823 + $0x58] sm:$0xff]
  %v836 = vld [vmem:[%s823 + $0x60] sm:$0xff]
  %v837 = vld [vmem:[%s823 + $0x68] sm:$0xff]
  %v838 = vld [vmem:[%s823 + $0x70] sm:$0xff]
  %v839 = vld [vmem:[%s823 + $0x78] sm:$0xff]
  %v840 = vld [vmem:[%s823 + $0x80] sm:$0xff]
  %v841 = vld [vmem:[%s823 + $0x88] sm:$0xff]
  %v842 = vld [vmem:[%s823 + $0x90] sm:$0xff]
  %v843 = vld [vmem:[%s823 + $0x98] sm:$0xff]
  %v844 = vld [vmem:[%s823 + $0xa0] sm:$0xff]
  %v845 = vld [vmem:[%s823 + $0xa8] sm:$0xff]
  %v846 = vld [vmem:[%s823 + $0xb0] sm:$0xff]
  %v847 = vld [vmem:[%s823 + $0xb8] sm:$0xff]
  %v848 = vld [vmem:[%s823 + $0xc0] sm:$0xff]
  %v849 = vld [vmem:[%s823 + $0xc8] sm:$0xff]
  %v850 = vld [vmem:[%s823 + $0xd0] sm:$0xff]
  %v851 = vld [vmem:[%s823 + $0xd8] sm:$0xff]
  %v852 = vld [vmem:[%s823 + $0xe0] sm:$0xff]
  %v853 = vld [vmem:[%s823 + $0xe8] sm:$0xff]
  %v854 = vld [vmem:[%s823 + $0xf0] sm:$0xff]
  %v855 = vld [vmem:[%s823 + $0xf8] sm:$0xff]
  %857 = vset.pattern.permute.xlu0 0
  %858 = vperm.xlu0 %857, %v824
  %v859 = vpop.permute.xlu0 %858
  %862 = vset.pattern.permute.xlu0 0
  %863 = vperm.xlu0 %862, %v825
  %v864 = vpop.permute.xlu0 %863
  %867 = vset.pattern.permute.xlu0 0
  %868 = vperm.xlu0 %867, %v826
  %v869 = vpop.permute.xlu0 %868
  %872 = vset.pattern.permute.xlu0 0
  %873 = vperm.xlu0 %872, %v827
  %v874 = vpop.permute.xlu0 %873
  %877 = vset.pattern.permute.xlu0 0
  %878 = vperm.xlu0 %877, %v828
  %v879 = vpop.permute.xlu0 %878
  %882 = vset.pattern.permute.xlu0 0
  %883 = vperm.xlu0 %882, %v829
  %v884 = vpop.permute.xlu0 %883
  %887 = vset.pattern.permute.xlu0 0
  %888 = vperm.xlu0 %887, %v830
  %v889 = vpop.permute.xlu0 %888
  %892 = vset.pattern.permute.xlu0 0
  %893 = vperm.xlu0 %892, %v831
  %v894 = vpop.permute.xlu0 %893
  %897 = vset.pattern.permute.xlu0 0
  %898 = vperm.xlu0 %897, %v832
  %v899 = vpop.permute.xlu0 %898
  %902 = vset.pattern.permute.xlu0 0
  %903 = vperm.xlu0 %902, %v833
  %v904 = vpop.permute.xlu0 %903
  %907 = vset.pattern.permute.xlu0 0
  %908 = vperm.xlu0 %907, %v834
  %v909 = vpop.permute.xlu0 %908
  %912 = vset.pattern.permute.xlu0 0
  %913 = vperm.xlu0 %912, %v835
  %v914 = vpop.permute.xlu0 %913
  %917 = vset.pattern.permute.xlu0 0
  %918 = vperm.xlu0 %917, %v836
  %v919 = vpop.permute.xlu0 %918
  %922 = vset.pattern.permute.xlu0 0
  %923 = vperm.xlu0 %922, %v837
  %v924 = vpop.permute.xlu0 %923
  %927 = vset.pattern.permute.xlu0 0
  %928 = vperm.xlu0 %927, %v838
  %v929 = vpop.permute.xlu0 %928
  %932 = vset.pattern.permute.xlu0 0
  %933 = vperm.xlu0 %932, %v839
  %v934 = vpop.permute.xlu0 %933
  %937 = vset.pattern.permute.xlu0 0
  %938 = vperm.xlu0 %937, %v840
  %v939 = vpop.permute.xlu0 %938
  %942 = vset.pattern.permute.xlu0 0
  %943 = vperm.xlu0 %942, %v841
  %v944 = vpop.permute.xlu0 %943
  %947 = vset.pattern.permute.xlu0 0
  %948 = vperm.xlu0 %947, %v842
  %v949 = vpop.permute.xlu0 %948
  %952 = vset.pattern.permute.xlu0 0
  %953 = vperm.xlu0 %952, %v843
  %v954 = vpop.permute.xlu0 %953
  %957 = vset.pattern.permute.xlu0 0
  %958 = vperm.xlu0 %957, %v844
  %v959 = vpop.permute.xlu0 %958
  %962 = vset.pattern.permute.xlu0 0
  %963 = vperm.xlu0 %962, %v845
  %v964 = vpop.permute.xlu0 %963
  %967 = vset.pattern.permute.xlu0 0
  %968 = vperm.xlu0 %967, %v846
  %v969 = vpop.permute.xlu0 %968
  %972 = vset.pattern.permute.xlu0 0
  %973 = vperm.xlu0 %972, %v847
  %v974 = vpop.permute.xlu0 %973
  %977 = vset.pattern.permute.xlu0 0
  %978 = vperm.xlu0 %977, %v848
  %v979 = vpop.permute.xlu0 %978
  %982 = vset.pattern.permute.xlu0 0
  %983 = vperm.xlu0 %982, %v849
  %v984 = vpop.permute.xlu0 %983
  %987 = vset.pattern.permute.xlu0 0
  %988 = vperm.xlu0 %987, %v850
  %v989 = vpop.permute.xlu0 %988
  %992 = vset.pattern.permute.xlu0 0
  %993 = vperm.xlu0 %992, %v851
  %v994 = vpop.permute.xlu0 %993
  %997 = vset.pattern.permute.xlu0 0
  %998 = vperm.xlu0 %997, %v852
  %v999 = vpop.permute.xlu0 %998
  %1002 = vset.pattern.permute.xlu0 0
  %1003 = vperm.xlu0 %1002, %v853
  %v1004 = vpop.permute.xlu0 %1003
  %1007 = vset.pattern.permute.xlu0 0
  %1008 = vperm.xlu0 %1007, %v854
  %v1009 = vpop.permute.xlu0 %1008
  %1012 = vset.pattern.permute.xlu0 0
  %1013 = vperm.xlu0 %1012, %v855
  %v1014 = vpop.permute.xlu0 %1013
  %1016 = vmatprep.subr.mxu0 0.0
  %1017 = vmatpush1.msra.mxu0 %v727
  %1018 = vmatprep.subr.mxu0 0.0
  %1019 = vmatpush1.msra.mxu0 %v728
  %1020 = vmatprep.subr.mxu0 0.0
  %1021 = vmatpush1.msra.mxu0 %v729
  %1022 = vmatprep.subr.mxu0 0.0
  %1023 = vmatpush1.msra.mxu0 %v730
  %1024 = vmatprep.subr.mxu0 0.0
  %1025 = vmatpush1.msra.mxu0 %v731
  %1026 = vmatprep.subr.mxu0 0.0
  %1027 = vmatpush1.msra.mxu0 %v732
  %1028 = vmatprep.subr.mxu0 0.0
  %1029 = vmatpush1.msra.mxu0 %v733
  %1030 = vmatprep.subr.mxu0 0.0
  %1031 = vmatpush1.msra.mxu0 %v734
  %1032 = vmatprep.subr.mxu0 0.0
  %1033 = vmatpush1.msra.mxu0 %v735
  %1034 = vmatprep.subr.mxu0 0.0
  %1035 = vmatpush1.msra.mxu0 %v736
  %1036 = vmatprep.subr.mxu0 0.0
  %1037 = vmatpush1.msra.mxu0 %v737
  %1038 = vmatprep.subr.mxu0 0.0
  %1039 = vmatpush1.msra.mxu0 %v738
  %1040 = vmatprep.subr.mxu0 0.0
  %1041 = vmatpush1.msra.mxu0 %v739
  %1042 = vmatprep.subr.mxu0 0.0
  %1043 = vmatpush1.msra.mxu0 %v740
  %1044 = vmatprep.subr.mxu0 0.0
  %1045 = vmatpush1.msra.mxu0 %v741
  %1046 = vmatprep.subr.mxu0 0.0
  %1047 = vmatpush1.msra.mxu0 %v742
  %1048 = vmatprep.subr.mxu0 0.0
  %1049 = vmatpush1.msra.mxu0 %v743
  %1050 = vmatprep.subr.mxu0 0.0
  %1051 = vmatpush1.msra.mxu0 %v744
  %1052 = vmatprep.subr.mxu0 0.0
  %1053 = vmatpush1.msra.mxu0 %v745
  %1054 = vmatprep.subr.mxu0 0.0
  %1055 = vmatpush1.msra.mxu0 %v746
  %1056 = vmatprep.subr.mxu0 0.0
  %1057 = vmatpush1.msra.mxu0 %v747
  %1058 = vmatprep.subr.mxu0 0.0
  %1059 = vmatpush1.msra.mxu0 %v748
  %1060 = vmatprep.subr.mxu0 0.0
  %1061 = vmatpush1.msra.mxu0 %v749
  %1062 = vmatprep.subr.mxu0 0.0
  %1063 = vmatpush1.msra.mxu0 %v750
  %1064 = vmatprep.subr.mxu0 0.0
  %1065 = vmatpush1.msra.mxu0 %v751
  %1066 = vmatprep.subr.mxu0 0.0
  %1067 = vmatpush1.msra.mxu0 %v752
  %1068 = vmatprep.subr.mxu0 0.0
  %1069 = vmatpush1.msra.mxu0 %v753
  %1070 = vmatprep.subr.mxu0 0.0
  %1071 = vmatpush1.msra.mxu0 %v754
  %1072 = vmatprep.subr.mxu0 0.0
  %1073 = vmatpush1.msra.mxu0 %v755
  %1074 = vmatprep.subr.mxu0 0.0
  %1075 = vmatpush1.msra.mxu0 %v756
  %1076 = vmatprep.subr.mxu0 0.0
  %1077 = vmatpush1.msra.mxu0 %v757
  %1078 = vmatprep.subr.mxu0 0.0
  %1079 = vmatpush1.msra.mxu0 %v758
  %1080 = vmatprep.mubr.f32.mxu0 %v760
  %1081 = vmatmul.mubr.f32.gmra.mrb[0].mxu0 %v759
  %v1082 = vpop.f32.mrb[0].mxu0
  %v1083 = vadd.f32 %v859, %v1082
  %v1084 = vpop.f32.mrb[0].mxu0
  %1085 = vmatprep.mubr.f32.mxu0 %v762
  %1086 = vmatmul.mubr.f32.gmra.mrb[0].mxu0 %v761
  %v1087 = vpop.f32.mrb[0].mxu0
  %v1088 = vadd.f32 %v864, %v1087
  %v1089 = vpop.f32.mrb[0].mxu0
  %1090 = vmatprep.mubr.f32.mxu0 %v764
  %1091 = vmatmul.mubr.f32.gmra.mrb[0].mxu0 %v763
  %v1092 = vpop.f32.mrb[0].mxu0
  %v1093 = vadd.f32 %v869, %v1092
  %v1094 = vpop.f32.mrb[0].mxu0
  %1095 = vmatprep.mubr.f32.mxu0 %v766
  %1096 = vmatmul.mubr.f32.gmra.mrb[0].mxu0 %v765
  %v1097 = vpop.f32.mrb[0].mxu0
  %v1098 = vadd.f32 %v874, %v1097
  %v1099 = vpop.f32.mrb[0].mxu0
  %1100 = vmatprep.mubr.f32.mxu0 %v768
  %1101 = vmatmul.mubr.f32.gmra.mrb[0].mxu0 %v767
  %v1102 = vpop.f32.mrb[0].mxu0
  %v1103 = vadd.f32 %v879, %v1102
  %v1104 = vpop.f32.mrb[0].mxu0
  %1105 = vmatprep.mubr.f32.mxu0 %v770
  %1106 = vmatmul.mubr.f32.gmra.mrb[0].mxu0 %v769
  %v1107 = vpop.f32.mrb[0].mxu0
  %v1108 = vadd.f32 %v884, %v1107
  %v1109 = vpop.f32.mrb[0].mxu0
  %1110 = vmatprep.mubr.f32.mxu0 %v772
  %1111 = vmatmul.mubr.f32.gmra.mrb[0].mxu0 %v771
  %v1112 = vpop.f32.mrb[0].mxu0
  %v1113 = vadd.f32 %v889, %v1112
  %v1114 = vpop.f32.mrb[0].mxu0
  %1115 = vmatprep.mubr.f32.mxu0 %v774
  %1116 = vmatmul.mubr.f32.gmra.mrb[0].mxu0 %v773
  %v1117 = vpop.f32.mrb[0].mxu0
  %v1118 = vadd.f32 %v894, %v1117
  %v1119 = vpop.f32.mrb[0].mxu0
  %1120 = vmatprep.mubr.f32.mxu0 %v776
  %1121 = vmatmul.mubr.f32.gmra.mrb[0].mxu0 %v775
  %v1122 = vpop.f32.mrb[0].mxu0
  %v1123 = vadd.f32 %v899, %v1122
  %v1124 = vpop.f32.mrb[0].mxu0
  %1125 = vmatprep.mubr.f32.mxu0 %v778
  %1126 = vmatmul.mubr.f32.gmra.mrb[0].mxu0 %v777
  %v1127 = vpop.f32.mrb[0].mxu0
  %v1128 = vadd.f32 %v904, %v1127
  %v1129 = vpop.f32.mrb[0].mxu0
  %1130 = vmatprep.mubr.f32.mxu0 %v780
  %1131 = vmatmul.mubr.f32.gmra.mrb[0].mxu0 %v779
  %v1132 = vpop.f32.mrb[0].mxu0
  %v1133 = vadd.f32 %v909, %v1132
  %v1134 = vpop.f32.mrb[0].mxu0
  %1135 = vmatprep.mubr.f32.mxu0 %v782
  %1136 = vmatmul.mubr.f32.gmra.mrb[0].mxu0 %v781
  %v1137 = vpop.f32.mrb[0].mxu0
  %v1138 = vadd.f32 %v914, %v1137
  %v1139 = vpop.f32.mrb[0].mxu0
  %1140 = vmatprep.mubr.f32.mxu0 %v784
  %1141 = vmatmul.mubr.f32.gmra.mrb[0].mxu0 %v783
  %v1142 = vpop.f32.mrb[0].mxu0
  %v1143 = vadd.f32 %v919, %v1142
  %v1144 = vpop.f32.mrb[0].mxu0
  %1145 = vmatprep.mubr.f32.mxu0 %v786
  %1146 = vmatmul.mubr.f32.gmra.mrb[0].mxu0 %v785
  %v1147 = vpop.f32.mrb[0].mxu0
  %v1148 = vadd.f32 %v924, %v1147
  %v1149 = vpop.f32.mrb[0].mxu0
  %1150 = vmatprep.mubr.f32.mxu0 %v788
  %1151 = vmatmul.mubr.f32.gmra.mrb[0].mxu0 %v787
  %v1152 = vpop.f32.mrb[0].mxu0
  %v1153 = vadd.f32 %v929, %v1152
  %v1154 = vpop.f32.mrb[0].mxu0
  %1155 = vmatprep.mubr.f32.mxu0 %v790
  %1156 = vmatmul.mubr.f32.gmra.mrb[0].mxu0 %v789
  %v1157 = vpop.f32.mrb[0].mxu0
  %v1158 = vadd.f32 %v934, %v1157
  %v1159 = vpop.f32.mrb[0].mxu0
  %1160 = vmatprep.mubr.f32.mxu0 %v792
  %1161 = vmatmul.mubr.f32.gmra.mrb[0].mxu0 %v791
  %v1162 = vpop.f32.mrb[0].mxu0
  %v1163 = vadd.f32 %v939, %v1162
  %v1164 = vpop.f32.mrb[0].mxu0
  %1165 = vmatprep.mubr.f32.mxu0 %v794
  %1166 = vmatmul.mubr.f32.gmra.mrb[0].mxu0 %v793
  %v1167 = vpop.f32.mrb[0].mxu0
  %v1168 = vadd.f32 %v944, %v1167
  %v1169 = vpop.f32.mrb[0].mxu0
  %1170 = vmatprep.mubr.f32.mxu0 %v796
  %1171 = vmatmul.mubr.f32.gmra.mrb[0].mxu0 %v795
  %v1172 = vpop.f32.mrb[0].mxu0
  %v1173 = vadd.f32 %v949, %v1172
  %v1174 = vpop.f32.mrb[0].mxu0
  %1175 = vmatprep.mubr.f32.mxu0 %v798
  %1176 = vmatmul.mubr.f32.gmra.mrb[0].mxu0 %v797
  %v1177 = vpop.f32.mrb[0].mxu0
  %v1178 = vadd.f32 %v954, %v1177
  %v1179 = vpop.f32.mrb[0].mxu0
  %1180 = vmatprep.mubr.f32.mxu0 %v800
  %1181 = vmatmul.mubr.f32.gmra.mrb[0].mxu0 %v799
  %v1182 = vpop.f32.mrb[0].mxu0
  %v1183 = vadd.f32 %v959, %v1182
  %v1184 = vpop.f32.mrb[0].mxu0
  %1185 = vmatprep.mubr.f32.mxu0 %v802
  %1186 = vmatmul.mubr.f32.gmra.mrb[0].mxu0 %v801
  %v1187 = vpop.f32.mrb[0].mxu0
  %v1188 = vadd.f32 %v964, %v1187
  %v1189 = vpop.f32.mrb[0].mxu0
  %1190 = vmatprep.mubr.f32.mxu0 %v804
  %1191 = vmatmul.mubr.f32.gmra.mrb[0].mxu0 %v803
  %v1192 = vpop.f32.mrb[0].mxu0
  %v1193 = vadd.f32 %v969, %v1192
  %v1194 = vpop.f32.mrb[0].mxu0
  %1195 = vmatprep.mubr.f32.mxu0 %v806
  %1196 = vmatmul.mubr.f32.gmra.mrb[0].mxu0 %v805
  %v1197 = vpop.f32.mrb[0].mxu0
  %v1198 = vadd.f32 %v974, %v1197
  %v1199 = vpop.f32.mrb[0].mxu0
  %1200 = vmatprep.mubr.f32.mxu0 %v808
  %1201 = vmatmul.mubr.f32.gmra.mrb[0].mxu0 %v807
  %v1202 = vpop.f32.mrb[0].mxu0
  %v1203 = vadd.f32 %v979, %v1202
  %v1204 = vpop.f32.mrb[0].mxu0
  %1205 = vmatprep.mubr.f32.mxu0 %v810
  %1206 = vmatmul.mubr.f32.gmra.mrb[0].mxu0 %v809
  %v1207 = vpop.f32.mrb[0].mxu0
  %v1208 = vadd.f32 %v984, %v1207
  %v1209 = vpop.f32.mrb[0].mxu0
  %1210 = vmatprep.mubr.f32.mxu0 %v812
  %1211 = vmatmul.mubr.f32.gmra.mrb[0].mxu0 %v811
  %v1212 = vpop.f32.mrb[0].mxu0
  %v1213 = vadd.f32 %v989, %v1212
  %v1214 = vpop.f32.mrb[0].mxu0
  %1215 = vmatprep.mubr.f32.mxu0 %v814
  %1216 = vmatmul.mubr.f32.gmra.mrb[0].mxu0 %v813
  %v1217 = vpop.f32.mrb[0].mxu0
  %v1218 = vadd.f32 %v994, %v1217
  %v1219 = vpop.f32.mrb[0].mxu0
  %1220 = vmatprep.mubr.f32.mxu0 %v816
  %1221 = vmatmul.mubr.f32.gmra.mrb[0].mxu0 %v815
  %v1222 = vpop.f32.mrb[0].mxu0
  %v1223 = vadd.f32 %v999, %v1222
  %v1224 = vpop.f32.mrb[0].mxu0
  %1225 = vmatprep.mubr.f32.mxu0 %v818
  %1226 = vmatmul.mubr.f32.gmra.mrb[0].mxu0 %v817
  %v1227 = vpop.f32.mrb[0].mxu0
  %v1228 = vadd.f32 %v1004, %v1227
  %v1229 = vpop.f32.mrb[0].mxu0
  %1230 = vmatprep.mubr.f32.mxu0 %v820
  %1231 = vmatmul.mubr.f32.gmra.mrb[0].mxu0 %v819
  %v1232 = vpop.f32.mrb[0].mxu0
  %v1233 = vadd.f32 %v1009, %v1232
  %v1234 = vpop.f32.mrb[0].mxu0
  %1235 = vmatprep.mubr.f32.mxu0 %v822
  %1236 = vmatmul.mubr.f32.gmra.mrb[0].mxu0 %v821
  %v1237 = vpop.f32.mrb[0].mxu0
  %v1238 = vadd.f32 %v1014, %v1237
  %v1239 = vpop.f32.mrb[0].mxu0
  %1240 = vdwg.mxu0
  %v1241 = vmin.f32 %v1083, 0.0
  %v1242 = vmin.f32 %v1088, 0.0
  %v1243 = vmin.f32 %v1093, 0.0
  %v1244 = vmin.f32 %v1098, 0.0
  %v1245 = vmin.f32 %v1103, 0.0
  %v1246 = vmin.f32 %v1108, 0.0
  %v1247 = vmin.f32 %v1113, 0.0
  %v1248 = vmin.f32 %v1118, 0.0
  %v1249 = vmin.f32 %v1123, 0.0
  %v1250 = vmin.f32 %v1128, 0.0
  %v1251 = vmin.f32 %v1133, 0.0
  %v1252 = vmin.f32 %v1138, 0.0
  %v1253 = vmin.f32 %v1143, 0.0
  %v1254 = vmin.f32 %v1148, 0.0
  %v1255 = vmin.f32 %v1153, 0.0
  %v1256 = vmin.f32 %v1158, 0.0
  %v1257 = vmin.f32 %v1163, 0.0
  %v1258 = vmin.f32 %v1168, 0.0
  %v1259 = vmin.f32 %v1173, 0.0
  %v1260 = vmin.f32 %v1178, 0.0
  %v1261 = vmin.f32 %v1183, 0.0
  %v1262 = vmin.f32 %v1188, 0.0
  %v1263 = vmin.f32 %v1193, 0.0
  %v1264 = vmin.f32 %v1198, 0.0
  %v1265 = vmin.f32 %v1203, 0.0
  %v1266 = vmin.f32 %v1208, 0.0
  %v1267 = vmin.f32 %v1213, 0.0
  %v1268 = vmin.f32 %v1218, 0.0
  %v1269 = vmin.f32 %v1223, 0.0
  %v1270 = vmin.f32 %v1228, 0.0
  %v1271 = vmin.f32 %v1233, 0.0
  %v1272 = vmin.f32 %v1238, 0.0
  %vm1273 = vcmp.gt.f32.partialorder %v1083, 0.0
  %vm1274 = vcmp.gt.f32.partialorder %v1088, 0.0
  %vm1275 = vcmp.gt.f32.partialorder %v1093, 0.0
  %vm1276 = vcmp.gt.f32.partialorder %v1098, 0.0
  %vm1277 = vcmp.gt.f32.partialorder %v1103, 0.0
  %vm1278 = vcmp.gt.f32.partialorder %v1108, 0.0
  %vm1279 = vcmp.gt.f32.partialorder %v1113, 0.0
  %vm1280 = vcmp.gt.f32.partialorder %v1118, 0.0
  %vm1281 = vcmp.gt.f32.partialorder %v1123, 0.0
  %vm1282 = vcmp.gt.f32.partialorder %v1128, 0.0
  %vm1283 = vcmp.gt.f32.partialorder %v1133, 0.0
  %vm1284 = vcmp.gt.f32.partialorder %v1138, 0.0
  %vm1285 = vcmp.gt.f32.partialorder %v1143, 0.0
  %vm1286 = vcmp.gt.f32.partialorder %v1148, 0.0
  %vm1287 = vcmp.gt.f32.partialorder %v1153, 0.0
  %vm1288 = vcmp.gt.f32.partialorder %v1158, 0.0
  %vm1289 = vcmp.gt.f32.partialorder %v1163, 0.0
  %vm1290 = vcmp.gt.f32.partialorder %v1168, 0.0
  %vm1291 = vcmp.gt.f32.partialorder %v1173, 0.0
  %vm1292 = vcmp.gt.f32.partialorder %v1178, 0.0
  %vm1293 = vcmp.gt.f32.partialorder %v1183, 0.0
  %vm1294 = vcmp.gt.f32.partialorder %v1188, 0.0
  %vm1295 = vcmp.gt.f32.partialorder %v1193, 0.0
  %vm1296 = vcmp.gt.f32.partialorder %v1198, 0.0
  %vm1297 = vcmp.gt.f32.partialorder %v1203, 0.0
  %vm1298 = vcmp.gt.f32.partialorder %v1208, 0.0
  %vm1299 = vcmp.gt.f32.partialorder %v1213, 0.0
  %vm1300 = vcmp.gt.f32.partialorder %v1218, 0.0
  %vm1301 = vcmp.gt.f32.partialorder %v1223, 0.0
  %vm1302 = vcmp.gt.f32.partialorder %v1228, 0.0
  %vm1303 = vcmp.gt.f32.partialorder %v1233, 0.0
  %vm1304 = vcmp.gt.f32.partialorder %v1238, 0.0
  %v1305 = vmul.f32 %v1241, 1.442695
  %v1306 = vpow.pop %v1305
  %v1307 = vmul.f32 %v1242, 1.442695
  %v1308 = vpow.pop %v1307
  %v1309 = vmul.f32 %v1243, 1.442695
  %v1310 = vpow.pop %v1309
  %v1311 = vmul.f32 %v1244, 1.442695
  %v1312 = vpow.pop %v1311
  %v1313 = vmul.f32 %v1245, 1.442695
  %v1314 = vpow.pop %v1313
  %v1315 = vmul.f32 %v1246, 1.442695
  %v1316 = vpow.pop %v1315
  %v1317 = vmul.f32 %v1247, 1.442695
  %v1318 = vpow.pop %v1317
  %v1319 = vmul.f32 %v1248, 1.442695
  %v1320 = vpow.pop %v1319
  %v1321 = vmul.f32 %v1249, 1.442695
  %v1322 = vpow.pop %v1321
  %v1323 = vmul.f32 %v1250, 1.442695
  %v1324 = vpow.pop %v1323
  %v1325 = vmul.f32 %v1251, 1.442695
  %v1326 = vpow.pop %v1325
  %v1327 = vmul.f32 %v1252, 1.442695
  %v1328 = vpow.pop %v1327
  %v1329 = vmul.f32 %v1253, 1.442695
  %v1330 = vpow.pop %v1329
  %v1331 = vmul.f32 %v1254, 1.442695
  %v1332 = vpow.pop %v1331
  %v1333 = vmul.f32 %v1255, 1.442695
  %v1334 = vpow.pop %v1333
  %v1335 = vmul.f32 %v1256, 1.442695
  %v1336 = vpow.pop %v1335
  %v1337 = vmul.f32 %v1257, 1.442695
  %v1338 = vpow.pop %v1337
  %v1339 = vmul.f32 %v1258, 1.442695
  %v1340 = vpow.pop %v1339
  %v1341 = vmul.f32 %v1259, 1.442695
  %v1342 = vpow.pop %v1341
  %v1343 = vmul.f32 %v1260, 1.442695
  %v1344 = vpow.pop %v1343
  %v1345 = vmul.f32 %v1261, 1.442695
  %v1346 = vpow.pop %v1345
  %v1347 = vmul.f32 %v1262, 1.442695
  %v1348 = vpow.pop %v1347
  %v1349 = vmul.f32 %v1263, 1.442695
  %v1350 = vpow.pop %v1349
  %v1351 = vmul.f32 %v1264, 1.442695
  %v1352 = vpow.pop %v1351
  %v1353 = vmul.f32 %v1265, 1.442695
  %v1354 = vpow.pop %v1353
  %v1355 = vmul.f32 %v1266, 1.442695
  %v1356 = vpow.pop %v1355
  %v1357 = vmul.f32 %v1267, 1.442695
  %v1358 = vpow.pop %v1357
  %v1359 = vmul.f32 %v1268, 1.442695
  %v1360 = vpow.pop %v1359
  %v1361 = vmul.f32 %v1269, 1.442695
  %v1362 = vpow.pop %v1361
  %v1363 = vmul.f32 %v1270, 1.442695
  %v1364 = vpow.pop %v1363
  %v1365 = vmul.f32 %v1271, 1.442695
  %v1366 = vpow.pop %v1365
  %v1367 = vmul.f32 %v1272, 1.442695
  %v1368 = vpow.pop %v1367
  %v1369 = vsub.f32 %v1306, 1.0
  %v1370 = vsub.f32 %v1308, 1.0
  %v1371 = vsub.f32 %v1310, 1.0
  %v1372 = vsub.f32 %v1312, 1.0
  %v1373 = vsub.f32 %v1314, 1.0
  %v1374 = vsub.f32 %v1316, 1.0
  %v1375 = vsub.f32 %v1318, 1.0
  %v1376 = vsub.f32 %v1320, 1.0
  %v1377 = vsub.f32 %v1322, 1.0
  %v1378 = vsub.f32 %v1324, 1.0
  %v1379 = vsub.f32 %v1326, 1.0
  %v1380 = vsub.f32 %v1328, 1.0
  %v1381 = vsub.f32 %v1330, 1.0
  %v1382 = vsub.f32 %v1332, 1.0
  %v1383 = vsub.f32 %v1334, 1.0
  %v1384 = vsub.f32 %v1336, 1.0
  %v1385 = vsub.f32 %v1338, 1.0
  %v1386 = vsub.f32 %v1340, 1.0
  %v1387 = vsub.f32 %v1342, 1.0
  %v1388 = vsub.f32 %v1344, 1.0
  %v1389 = vsub.f32 %v1346, 1.0
  %v1390 = vsub.f32 %v1348, 1.0
  %v1391 = vsub.f32 %v1350, 1.0
  %v1392 = vsub.f32 %v1352, 1.0
  %v1393 = vsub.f32 %v1354, 1.0
  %v1394 = vsub.f32 %v1356, 1.0
  %v1395 = vsub.f32 %v1358, 1.0
  %v1396 = vsub.f32 %v1360, 1.0
  %v1397 = vsub.f32 %v1362, 1.0
  %v1398 = vsub.f32 %v1364, 1.0
  %v1399 = vsub.f32 %v1366, 1.0
  %v1400 = vsub.f32 %v1368, 1.0
  %v1401 = vsel %vm1273, %v1083, %v1369
  %v1402 = vsel %vm1274, %v1088, %v1370
  %v1403 = vsel %vm1275, %v1093, %v1371
  %v1404 = vsel %vm1276, %v1098, %v1372
  %v1405 = vsel %vm1277, %v1103, %v1373
  %v1406 = vsel %vm1278, %v1108, %v1374
  %v1407 = vsel %vm1279, %v1113, %v1375
  %v1408 = vsel %vm1280, %v1118, %v1376
  %v1409 = vsel %vm1281, %v1123, %v1377
  %v1410 = vsel %vm1282, %v1128, %v1378
  %v1411 = vsel %vm1283, %v1133, %v1379
  %v1412 = vsel %vm1284, %v1138, %v1380
  %v1413 = vsel %vm1285, %v1143, %v1381
  %v1414 = vsel %vm1286, %v1148, %v1382
  %v1415 = vsel %vm1287, %v1153, %v1383
  %v1416 = vsel %vm1288, %v1158, %v1384
  %v1417 = vsel %vm1289, %v1163, %v1385
  %v1418 = vsel %vm1290, %v1168, %v1386
  %v1419 = vsel %vm1291, %v1173, %v1387
  %v1420 = vsel %vm1292, %v1178, %v1388
  %v1421 = vsel %vm1293, %v1183, %v1389
  %v1422 = vsel %vm1294, %v1188, %v1390
  %v1423 = vsel %vm1295, %v1193, %v1391
  %v1424 = vsel %vm1296, %v1198, %v1392
  %v1425 = vsel %vm1297, %v1203, %v1393
  %v1426 = vsel %vm1298, %v1208, %v1394
  %v1427 = vsel %vm1299, %v1213, %v1395
  %v1428 = vsel %vm1300, %v1218, %v1396
  %v1429 = vsel %vm1301, %v1223, %v1397
  %v1430 = vsel %vm1302, %v1228, %v1398
  %v1431 = vsel %vm1303, %v1233, %v1399
  %v1432 = vsel %vm1304, %v1238, %v1400
  %s1433 = scalar_lea.vmem %s2, 512
  %v1434 = vld [vmem:[%s1433] sm:$0xff]
  %v1435 = vld [vmem:[%s1433 + $0x8] sm:$0xff]
  %v1436 = vld [vmem:[%s1433 + $0x10] sm:$0xff]
  %v1437 = vld [vmem:[%s1433 + $0x18] sm:$0xff]
  %v1438 = vld [vmem:[%s1433 + $0x20] sm:$0xff]
  %v1439 = vld [vmem:[%s1433 + $0x28] sm:$0xff]
  %v1440 = vld [vmem:[%s1433 + $0x30] sm:$0xff]
  %v1441 = vld [vmem:[%s1433 + $0x38] sm:$0xff]
  %v1442 = vld [vmem:[%s1433 + $0x40] sm:$0xff]
  %v1443 = vld [vmem:[%s1433 + $0x48] sm:$0xff]
  %v1444 = vld [vmem:[%s1433 + $0x50] sm:$0xff]
  %v1445 = vld [vmem:[%s1433 + $0x58] sm:$0xff]
  %v1446 = vld [vmem:[%s1433 + $0x60] sm:$0xff]
  %v1447 = vld [vmem:[%s1433 + $0x68] sm:$0xff]
  %v1448 = vld [vmem:[%s1433 + $0x70] sm:$0xff]
  %v1449 = vld [vmem:[%s1433 + $0x78] sm:$0xff]
  %v1450 = vld [vmem:[%s1433 + $0x80] sm:$0xff]
  %v1451 = vld [vmem:[%s1433 + $0x88] sm:$0xff]
  %v1452 = vld [vmem:[%s1433 + $0x90] sm:$0xff]
  %v1453 = vld [vmem:[%s1433 + $0x98] sm:$0xff]
  %v1454 = vld [vmem:[%s1433 + $0xa0] sm:$0xff]
  %v1455 = vld [vmem:[%s1433 + $0xa8] sm:$0xff]
  %v1456 = vld [vmem:[%s1433 + $0xb0] sm:$0xff]
  %v1457 = vld [vmem:[%s1433 + $0xb8] sm:$0xff]
  %v1458 = vld [vmem:[%s1433 + $0xc0] sm:$0xff]
  %v1459 = vld [vmem:[%s1433 + $0xc8] sm:$0xff]
  %v1460 = vld [vmem:[%s1433 + $0xd0] sm:$0xff]
  %v1461 = vld [vmem:[%s1433 + $0xd8] sm:$0xff]
  %v1462 = vld [vmem:[%s1433 + $0xe0] sm:$0xff]
  %v1463 = vld [vmem:[%s1433 + $0xe8] sm:$0xff]
  %v1464 = vld [vmem:[%s1433 + $0xf0] sm:$0xff]
  %v1465 = vld [vmem:[%s1433 + $0xf8] sm:$0xff]
  %v1466 = vld [vmem:[%s1433 + $0x100] sm:$0xff]
  %v1467 = vld [vmem:[%s1433 + $0x108] sm:$0xff]
  %v1468 = vld [vmem:[%s1433 + $0x110] sm:$0xff]
  %v1469 = vld [vmem:[%s1433 + $0x118] sm:$0xff]
  %v1470 = vld [vmem:[%s1433 + $0x120] sm:$0xff]
  %v1471 = vld [vmem:[%s1433 + $0x128] sm:$0xff]
  %v1472 = vld [vmem:[%s1433 + $0x130] sm:$0xff]
  %v1473 = vld [vmem:[%s1433 + $0x138] sm:$0xff]
  %v1474 = vld [vmem:[%s1433 + $0x140] sm:$0xff]
  %v1475 = vld [vmem:[%s1433 + $0x148] sm:$0xff]
  %v1476 = vld [vmem:[%s1433 + $0x150] sm:$0xff]
  %v1477 = vld [vmem:[%s1433 + $0x158] sm:$0xff]
  %v1478 = vld [vmem:[%s1433 + $0x160] sm:$0xff]
  %v1479 = vld [vmem:[%s1433 + $0x168] sm:$0xff]
  %v1480 = vld [vmem:[%s1433 + $0x170] sm:$0xff]
  %v1481 = vld [vmem:[%s1433 + $0x178] sm:$0xff]
  %v1482 = vld [vmem:[%s1433 + $0x180] sm:$0xff]
  %v1483 = vld [vmem:[%s1433 + $0x188] sm:$0xff]
  %v1484 = vld [vmem:[%s1433 + $0x190] sm:$0xff]
  %v1485 = vld [vmem:[%s1433 + $0x198] sm:$0xff]
  %v1486 = vld [vmem:[%s1433 + $0x1a0] sm:$0xff]
  %v1487 = vld [vmem:[%s1433 + $0x1a8] sm:$0xff]
  %v1488 = vld [vmem:[%s1433 + $0x1b0] sm:$0xff]
  %v1489 = vld [vmem:[%s1433 + $0x1b8] sm:$0xff]
  %v1490 = vld [vmem:[%s1433 + $0x1c0] sm:$0xff]
  %v1491 = vld [vmem:[%s1433 + $0x1c8] sm:$0xff]
  %v1492 = vld [vmem:[%s1433 + $0x1d0] sm:$0xff]
  %v1493 = vld [vmem:[%s1433 + $0x1d8] sm:$0xff]
  %v1494 = vld [vmem:[%s1433 + $0x1e0] sm:$0xff]
  %v1495 = vld [vmem:[%s1433 + $0x1e8] sm:$0xff]
  %v1496 = vld [vmem:[%s1433 + $0x1f0] sm:$0xff]
  %v1497 = vld [vmem:[%s1433 + $0x1f8] sm:$0xff]
  %s1498 = scalar_lea.vmem %s4, 512
  %v1499 = vld [vmem:[%s1498] sm:$0xff]
  %v1500 = vld [vmem:[%s1498 + $0x8] sm:$0xff]
  %v1501 = vld [vmem:[%s1498 + $0x10] sm:$0xff]
  %v1502 = vld [vmem:[%s1498 + $0x18] sm:$0xff]
  %v1503 = vld [vmem:[%s1498 + $0x20] sm:$0xff]
  %v1504 = vld [vmem:[%s1498 + $0x28] sm:$0xff]
  %v1505 = vld [vmem:[%s1498 + $0x30] sm:$0xff]
  %v1506 = vld [vmem:[%s1498 + $0x38] sm:$0xff]
  %v1507 = vld [vmem:[%s1498 + $0x40] sm:$0xff]
  %v1508 = vld [vmem:[%s1498 + $0x48] sm:$0xff]
  %v1509 = vld [vmem:[%s1498 + $0x50] sm:$0xff]
  %v1510 = vld [vmem:[%s1498 + $0x58] sm:$0xff]
  %v1511 = vld [vmem:[%s1498 + $0x60] sm:$0xff]
  %v1512 = vld [vmem:[%s1498 + $0x68] sm:$0xff]
  %v1513 = vld [vmem:[%s1498 + $0x70] sm:$0xff]
  %v1514 = vld [vmem:[%s1498 + $0x78] sm:$0xff]
  %v1515 = vld [vmem:[%s1498 + $0x80] sm:$0xff]
  %v1516 = vld [vmem:[%s1498 + $0x88] sm:$0xff]
  %v1517 = vld [vmem:[%s1498 + $0x90] sm:$0xff]
  %v1518 = vld [vmem:[%s1498 + $0x98] sm:$0xff]
  %v1519 = vld [vmem:[%s1498 + $0xa0] sm:$0xff]
  %v1520 = vld [vmem:[%s1498 + $0xa8] sm:$0xff]
  %v1521 = vld [vmem:[%s1498 + $0xb0] sm:$0xff]
  %v1522 = vld [vmem:[%s1498 + $0xb8] sm:$0xff]
  %v1523 = vld [vmem:[%s1498 + $0xc0] sm:$0xff]
  %v1524 = vld [vmem:[%s1498 + $0xc8] sm:$0xff]
  %v1525 = vld [vmem:[%s1498 + $0xd0] sm:$0xff]
  %v1526 = vld [vmem:[%s1498 + $0xd8] sm:$0xff]
  %v1527 = vld [vmem:[%s1498 + $0xe0] sm:$0xff]
  %v1528 = vld [vmem:[%s1498 + $0xe8] sm:$0xff]
  %v1529 = vld [vmem:[%s1498 + $0xf0] sm:$0xff]
  %v1530 = vld [vmem:[%s1498 + $0xf8] sm:$0xff]
  %1532 = vset.pattern.permute.xlu0 0
  %1533 = vperm.xlu0 %1532, %v1499
  %v1534 = vpop.permute.xlu0 %1533
  %1537 = vset.pattern.permute.xlu0 0
  %1538 = vperm.xlu0 %1537, %v1500
  %v1539 = vpop.permute.xlu0 %1538
  %1542 = vset.pattern.permute.xlu0 0
  %1543 = vperm.xlu0 %1542, %v1501
  %v1544 = vpop.permute.xlu0 %1543
  %1547 = vset.pattern.permute.xlu0 0
  %1548 = vperm.xlu0 %1547, %v1502
  %v1549 = vpop.permute.xlu0 %1548
  %1552 = vset.pattern.permute.xlu0 0
  %1553 = vperm.xlu0 %1552, %v1503
  %v1554 = vpop.permute.xlu0 %1553
  %1557 = vset.pattern.permute.xlu0 0
  %1558 = vperm.xlu0 %1557, %v1504
  %v1559 = vpop.permute.xlu0 %1558
  %1562 = vset.pattern.permute.xlu0 0
  %1563 = vperm.xlu0 %1562, %v1505
  %v1564 = vpop.permute.xlu0 %1563
  %1567 = vset.pattern.permute.xlu0 0
  %1568 = vperm.xlu0 %1567, %v1506
  %v1569 = vpop.permute.xlu0 %1568
  %1572 = vset.pattern.permute.xlu0 0
  %1573 = vperm.xlu0 %1572, %v1507
  %v1574 = vpop.permute.xlu0 %1573
  %1577 = vset.pattern.permute.xlu0 0
  %1578 = vperm.xlu0 %1577, %v1508
  %v1579 = vpop.permute.xlu0 %1578
  %1582 = vset.pattern.permute.xlu0 0
  %1583 = vperm.xlu0 %1582, %v1509
  %v1584 = vpop.permute.xlu0 %1583
  %1587 = vset.pattern.permute.xlu0 0
  %1588 = vperm.xlu0 %1587, %v1510
  %v1589 = vpop.permute.xlu0 %1588
  %1592 = vset.pattern.permute.xlu0 0
  %1593 = vperm.xlu0 %1592, %v1511
  %v1594 = vpop.permute.xlu0 %1593
  %1597 = vset.pattern.permute.xlu0 0
  %1598 = vperm.xlu0 %1597, %v1512
  %v1599 = vpop.permute.xlu0 %1598
  %1602 = vset.pattern.permute.xlu0 0
  %1603 = vperm.xlu0 %1602, %v1513
  %v1604 = vpop.permute.xlu0 %1603
  %1607 = vset.pattern.permute.xlu0 0
  %1608 = vperm.xlu0 %1607, %v1514
  %v1609 = vpop.permute.xlu0 %1608
  %1612 = vset.pattern.permute.xlu0 0
  %1613 = vperm.xlu0 %1612, %v1515
  %v1614 = vpop.permute.xlu0 %1613
  %1617 = vset.pattern.permute.xlu0 0
  %1618 = vperm.xlu0 %1617, %v1516
  %v1619 = vpop.permute.xlu0 %1618
  %1622 = vset.pattern.permute.xlu0 0
  %1623 = vperm.xlu0 %1622, %v1517
  %v1624 = vpop.permute.xlu0 %1623
  %1627 = vset.pattern.permute.xlu0 0
  %1628 = vperm.xlu0 %1627, %v1518
  %v1629 = vpop.permute.xlu0 %1628
  %1632 = vset.pattern.permute.xlu0 0
  %1633 = vperm.xlu0 %1632, %v1519
  %v1634 = vpop.permute.xlu0 %1633
  %1637 = vset.pattern.permute.xlu0 0
  %1638 = vperm.xlu0 %1637, %v1520
  %v1639 = vpop.permute.xlu0 %1638
  %1642 = vset.pattern.permute.xlu0 0
  %1643 = vperm.xlu0 %1642, %v1521
  %v1644 = vpop.permute.xlu0 %1643
  %1647 = vset.pattern.permute.xlu0 0
  %1648 = vperm.xlu0 %1647, %v1522
  %v1649 = vpop.permute.xlu0 %1648
  %1652 = vset.pattern.permute.xlu0 0
  %1653 = vperm.xlu0 %1652, %v1523
  %v1654 = vpop.permute.xlu0 %1653
  %1657 = vset.pattern.permute.xlu0 0
  %1658 = vperm.xlu0 %1657, %v1524
  %v1659 = vpop.permute.xlu0 %1658
  %1662 = vset.pattern.permute.xlu0 0
  %1663 = vperm.xlu0 %1662, %v1525
  %v1664 = vpop.permute.xlu0 %1663
  %1667 = vset.pattern.permute.xlu0 0
  %1668 = vperm.xlu0 %1667, %v1526
  %v1669 = vpop.permute.xlu0 %1668
  %1672 = vset.pattern.permute.xlu0 0
  %1673 = vperm.xlu0 %1672, %v1527
  %v1674 = vpop.permute.xlu0 %1673
  %1677 = vset.pattern.permute.xlu0 0
  %1678 = vperm.xlu0 %1677, %v1528
  %v1679 = vpop.permute.xlu0 %1678
  %1682 = vset.pattern.permute.xlu0 0
  %1683 = vperm.xlu0 %1682, %v1529
  %v1684 = vpop.permute.xlu0 %1683
  %1687 = vset.pattern.permute.xlu0 0
  %1688 = vperm.xlu0 %1687, %v1530
  %v1689 = vpop.permute.xlu0 %1688
  %1691 = vmatprep.subr.mxu0 0.0
  %1692 = vmatpush1.msra.mxu0 %v1401
  %1693 = vmatprep.subr.mxu0 0.0
  %1694 = vmatpush1.msra.mxu0 %v1402
  %1695 = vmatprep.subr.mxu0 0.0
  %1696 = vmatpush1.msra.mxu0 %v1403
  %1697 = vmatprep.subr.mxu0 0.0
  %1698 = vmatpush1.msra.mxu0 %v1404
  %1699 = vmatprep.subr.mxu0 0.0
  %1700 = vmatpush1.msra.mxu0 %v1405
  %1701 = vmatprep.subr.mxu0 0.0
  %1702 = vmatpush1.msra.mxu0 %v1406
  %1703 = vmatprep.subr.mxu0 0.0
  %1704 = vmatpush1.msra.mxu0 %v1407
  %1705 = vmatprep.subr.mxu0 0.0
  %1706 = vmatpush1.msra.mxu0 %v1408
  %1707 = vmatprep.subr.mxu0 0.0
  %1708 = vmatpush1.msra.mxu0 %v1409
  %1709 = vmatprep.subr.mxu0 0.0
  %1710 = vmatpush1.msra.mxu0 %v1410
  %1711 = vmatprep.subr.mxu0 0.0
  %1712 = vmatpush1.msra.mxu0 %v1411
  %1713 = vmatprep.subr.mxu0 0.0
  %1714 = vmatpush1.msra.mxu0 %v1412
  %1715 = vmatprep.subr.mxu0 0.0
  %1716 = vmatpush1.msra.mxu0 %v1413
  %1717 = vmatprep.subr.mxu0 0.0
  %1718 = vmatpush1.msra.mxu0 %v1414
  %1719 = vmatprep.subr.mxu0 0.0
  %1720 = vmatpush1.msra.mxu0 %v1415
  %1721 = vmatprep.subr.mxu0 0.0
  %1722 = vmatpush1.msra.mxu0 %v1416
  %1723 = vmatprep.subr.mxu0 0.0
  %1724 = vmatpush1.msra.mxu0 %v1417
  %1725 = vmatprep.subr.mxu0 0.0
  %1726 = vmatpush1.msra.mxu0 %v1418
  %1727 = vmatprep.subr.mxu0 0.0
  %1728 = vmatpush1.msra.mxu0 %v1419
  %1729 = vmatprep.subr.mxu0 0.0
  %1730 = vmatpush1.msra.mxu0 %v1420
  %1731 = vmatprep.subr.mxu0 0.0
  %1732 = vmatpush1.msra.mxu0 %v1421
  %1733 = vmatprep.subr.mxu0 0.0
  %1734 = vmatpush1.msra.mxu0 %v1422
  %1735 = vmatprep.subr.mxu0 0.0
  %1736 = vmatpush1.msra.mxu0 %v1423
  %1737 = vmatprep.subr.mxu0 0.0
  %1738 = vmatpush1.msra.mxu0 %v1424
  %1739 = vmatprep.subr.mxu0 0.0
  %1740 = vmatpush1.msra.mxu0 %v1425
  %1741 = vmatprep.subr.mxu0 0.0
  %1742 = vmatpush1.msra.mxu0 %v1426
  %1743 = vmatprep.subr.mxu0 0.0
  %1744 = vmatpush1.msra.mxu0 %v1427
  %1745 = vmatprep.subr.mxu0 0.0
  %1746 = vmatpush1.msra.mxu0 %v1428
  %1747 = vmatprep.subr.mxu0 0.0
  %1748 = vmatpush1.msra.mxu0 %v1429
  %1749 = vmatprep.subr.mxu0 0.0
  %1750 = vmatpush1.msra.mxu0 %v1430
  %1751 = vmatprep.subr.mxu0 0.0
  %1752 = vmatpush1.msra.mxu0 %v1431
  %1753 = vmatprep.subr.mxu0 0.0
  %1754 = vmatpush1.msra.mxu0 %v1432
  %1755 = vmatprep.mubr.f32.mxu0 %v1435
  %1756 = vmatmul.mubr.f32.gmra.mrb[0].mxu0 %v1434
  %v1757 = vpop.f32.mrb[0].mxu0
  %v1758 = vadd.f32 %v1534, %v1757
  %v1759 = vpop.f32.mrb[0].mxu0
  %1760 = vmatprep.mubr.f32.mxu0 %v1437
  %1761 = vmatmul.mubr.f32.gmra.mrb[0].mxu0 %v1436
  %v1762 = vpop.f32.mrb[0].mxu0
  %v1763 = vadd.f32 %v1539, %v1762
  %v1764 = vpop.f32.mrb[0].mxu0
  %1765 = vmatprep.mubr.f32.mxu0 %v1439
  %1766 = vmatmul.mubr.f32.gmra.mrb[0].mxu0 %v1438
  %v1767 = vpop.f32.mrb[0].mxu0
  %v1768 = vadd.f32 %v1544, %v1767
  %v1769 = vpop.f32.mrb[0].mxu0
  %1770 = vmatprep.mubr.f32.mxu0 %v1441
  %1771 = vmatmul.mubr.f32.gmra.mrb[0].mxu0 %v1440
  %v1772 = vpop.f32.mrb[0].mxu0
  %v1773 = vadd.f32 %v1549, %v1772
  %v1774 = vpop.f32.mrb[0].mxu0
  %1775 = vmatprep.mubr.f32.mxu0 %v1443
  %1776 = vmatmul.mubr.f32.gmra.mrb[0].mxu0 %v1442
  %v1777 = vpop.f32.mrb[0].mxu0
  %v1778 = vadd.f32 %v1554, %v1777
  %v1779 = vpop.f32.mrb[0].mxu0
  %1780 = vmatprep.mubr.f32.mxu0 %v1445
  %1781 = vmatmul.mubr.f32.gmra.mrb[0].mxu0 %v1444
  %v1782 = vpop.f32.mrb[0].mxu0
  %v1783 = vadd.f32 %v1559, %v1782
  %v1784 = vpop.f32.mrb[0].mxu0
  %1785 = vmatprep.mubr.f32.mxu0 %v1447
  %1786 = vmatmul.mubr.f32.gmra.mrb[0].mxu0 %v1446
  %v1787 = vpop.f32.mrb[0].mxu0
  %v1788 = vadd.f32 %v1564, %v1787
  %v1789 = vpop.f32.mrb[0].mxu0
  %1790 = vmatprep.mubr.f32.mxu0 %v1449
  %1791 = vmatmul.mubr.f32.gmra.mrb[0].mxu0 %v1448
  %v1792 = vpop.f32.mrb[0].mxu0
  %v1793 = vadd.f32 %v1569, %v1792
  %v1794 = vpop.f32.mrb[0].mxu0
  %1795 = vmatprep.mubr.f32.mxu0 %v1451
  %1796 = vmatmul.mubr.f32.gmra.mrb[0].mxu0 %v1450
  %v1797 = vpop.f32.mrb[0].mxu0
  %v1798 = vadd.f32 %v1574, %v1797
  %v1799 = vpop.f32.mrb[0].mxu0
  %1800 = vmatprep.mubr.f32.mxu0 %v1453
  %1801 = vmatmul.mubr.f32.gmra.mrb[0].mxu0 %v1452
  %v1802 = vpop.f32.mrb[0].mxu0
  %v1803 = vadd.f32 %v1579, %v1802
  %v1804 = vpop.f32.mrb[0].mxu0
  %1805 = vmatprep.mubr.f32.mxu0 %v1455
  %1806 = vmatmul.mubr.f32.gmra.mrb[0].mxu0 %v1454
  %v1807 = vpop.f32.mrb[0].mxu0
  %v1808 = vadd.f32 %v1584, %v1807
  %v1809 = vpop.f32.mrb[0].mxu0
  %1810 = vmatprep.mubr.f32.mxu0 %v1457
  %1811 = vmatmul.mubr.f32.gmra.mrb[0].mxu0 %v1456
  %v1812 = vpop.f32.mrb[0].mxu0
  %v1813 = vadd.f32 %v1589, %v1812
  %v1814 = vpop.f32.mrb[0].mxu0
  %1815 = vmatprep.mubr.f32.mxu0 %v1459
  %1816 = vmatmul.mubr.f32.gmra.mrb[0].mxu0 %v1458
  %v1817 = vpop.f32.mrb[0].mxu0
  %v1818 = vadd.f32 %v1594, %v1817
  %v1819 = vpop.f32.mrb[0].mxu0
  %1820 = vmatprep.mubr.f32.mxu0 %v1461
  %1821 = vmatmul.mubr.f32.gmra.mrb[0].mxu0 %v1460
  %v1822 = vpop.f32.mrb[0].mxu0
  %v1823 = vadd.f32 %v1599, %v1822
  %v1824 = vpop.f32.mrb[0].mxu0
  %1825 = vmatprep.mubr.f32.mxu0 %v1463
  %1826 = vmatmul.mubr.f32.gmra.mrb[0].mxu0 %v1462
  %v1827 = vpop.f32.mrb[0].mxu0
  %v1828 = vadd.f32 %v1604, %v1827
  %v1829 = vpop.f32.mrb[0].mxu0
  %1830 = vmatprep.mubr.f32.mxu0 %v1465
  %1831 = vmatmul.mubr.f32.gmra.mrb[0].mxu0 %v1464
  %v1832 = vpop.f32.mrb[0].mxu0
  %v1833 = vadd.f32 %v1609, %v1832
  %v1834 = vpop.f32.mrb[0].mxu0
  %1835 = vmatprep.mubr.f32.mxu0 %v1467
  %1836 = vmatmul.mubr.f32.gmra.mrb[0].mxu0 %v1466
  %v1837 = vpop.f32.mrb[0].mxu0
  %v1838 = vadd.f32 %v1614, %v1837
  %v1839 = vpop.f32.mrb[0].mxu0
  %1840 = vmatprep.mubr.f32.mxu0 %v1469
  %1841 = vmatmul.mubr.f32.gmra.mrb[0].mxu0 %v1468
  %v1842 = vpop.f32.mrb[0].mxu0
  %v1843 = vadd.f32 %v1619, %v1842
  %v1844 = vpop.f32.mrb[0].mxu0
  %1845 = vmatprep.mubr.f32.mxu0 %v1471
  %1846 = vmatmul.mubr.f32.gmra.mrb[0].mxu0 %v1470
  %v1847 = vpop.f32.mrb[0].mxu0
  %v1848 = vadd.f32 %v1624, %v1847
  %v1849 = vpop.f32.mrb[0].mxu0
  %1850 = vmatprep.mubr.f32.mxu0 %v1473
  %1851 = vmatmul.mubr.f32.gmra.mrb[0].mxu0 %v1472
  %v1852 = vpop.f32.mrb[0].mxu0
  %v1853 = vadd.f32 %v1629, %v1852
  %v1854 = vpop.f32.mrb[0].mxu0
  %1855 = vmatprep.mubr.f32.mxu0 %v1475
  %1856 = vmatmul.mubr.f32.gmra.mrb[0].mxu0 %v1474
  %v1857 = vpop.f32.mrb[0].mxu0
  %v1858 = vadd.f32 %v1634, %v1857
  %v1859 = vpop.f32.mrb[0].mxu0
  %1860 = vmatprep.mubr.f32.mxu0 %v1477
  %1861 = vmatmul.mubr.f32.gmra.mrb[0].mxu0 %v1476
  %v1862 = vpop.f32.mrb[0].mxu0
  %v1863 = vadd.f32 %v1639, %v1862
  %v1864 = vpop.f32.mrb[0].mxu0
  %1865 = vmatprep.mubr.f32.mxu0 %v1479
  %1866 = vmatmul.mubr.f32.gmra.mrb[0].mxu0 %v1478
  %v1867 = vpop.f32.mrb[0].mxu0
  %v1868 = vadd.f32 %v1644, %v1867
  %v1869 = vpop.f32.mrb[0].mxu0
  %1870 = vmatprep.mubr.f32.mxu0 %v1481
  %1871 = vmatmul.mubr.f32.gmra.mrb[0].mxu0 %v1480
  %v1872 = vpop.f32.mrb[0].mxu0
  %v1873 = vadd.f32 %v1649, %v1872
  %v1874 = vpop.f32.mrb[0].mxu0
  %1875 = vmatprep.mubr.f32.mxu0 %v1483
  %1876 = vmatmul.mubr.f32.gmra.mrb[0].mxu0 %v1482
  %v1877 = vpop.f32.mrb[0].mxu0
  %v1878 = vadd.f32 %v1654, %v1877
  %v1879 = vpop.f32.mrb[0].mxu0
  %1880 = vmatprep.mubr.f32.mxu0 %v1485
  %1881 = vmatmul.mubr.f32.gmra.mrb[0].mxu0 %v1484
  %v1882 = vpop.f32.mrb[0].mxu0
  %v1883 = vadd.f32 %v1659, %v1882
  %v1884 = vpop.f32.mrb[0].mxu0
  %1885 = vmatprep.mubr.f32.mxu0 %v1487
  %1886 = vmatmul.mubr.f32.gmra.mrb[0].mxu0 %v1486
  %v1887 = vpop.f32.mrb[0].mxu0
  %v1888 = vadd.f32 %v1664, %v1887
  %v1889 = vpop.f32.mrb[0].mxu0
  %1890 = vmatprep.mubr.f32.mxu0 %v1489
  %1891 = vmatmul.mubr.f32.gmra.mrb[0].mxu0 %v1488
  %v1892 = vpop.f32.mrb[0].mxu0
  %v1893 = vadd.f32 %v1669, %v1892
  %v1894 = vpop.f32.mrb[0].mxu0
  %1895 = vmatprep.mubr.f32.mxu0 %v1491
  %1896 = vmatmul.mubr.f32.gmra.mrb[0].mxu0 %v1490
  %v1897 = vpop.f32.mrb[0].mxu0
  %v1898 = vadd.f32 %v1674, %v1897
  %v1899 = vpop.f32.mrb[0].mxu0
  %1900 = vmatprep.mubr.f32.mxu0 %v1493
  %1901 = vmatmul.mubr.f32.gmra.mrb[0].mxu0 %v1492
  %v1902 = vpop.f32.mrb[0].mxu0
  %v1903 = vadd.f32 %v1679, %v1902
  %v1904 = vpop.f32.mrb[0].mxu0
  %1905 = vmatprep.mubr.f32.mxu0 %v1495
  %1906 = vmatmul.mubr.f32.gmra.mrb[0].mxu0 %v1494
  %v1907 = vpop.f32.mrb[0].mxu0
  %v1908 = vadd.f32 %v1684, %v1907
  %v1909 = vpop.f32.mrb[0].mxu0
  %1910 = vmatprep.mubr.f32.mxu0 %v1497
  %1911 = vmatmul.mubr.f32.gmra.mrb[0].mxu0 %v1496
  %v1912 = vpop.f32.mrb[0].mxu0
  %v1913 = vadd.f32 %v1689, %v1912
  %v1914 = vpop.f32.mrb[0].mxu0
  %1915 = vdwg.mxu0
  %v1916 = vmin.f32 %v1758, 0.0
  %v1917 = vmin.f32 %v1763, 0.0
  %v1918 = vmin.f32 %v1768, 0.0
  %v1919 = vmin.f32 %v1773, 0.0
  %v1920 = vmin.f32 %v1778, 0.0
  %v1921 = vmin.f32 %v1783, 0.0
  %v1922 = vmin.f32 %v1788, 0.0
  %v1923 = vmin.f32 %v1793, 0.0
  %v1924 = vmin.f32 %v1798, 0.0
  %v1925 = vmin.f32 %v1803, 0.0
  %v1926 = vmin.f32 %v1808, 0.0
  %v1927 = vmin.f32 %v1813, 0.0
  %v1928 = vmin.f32 %v1818, 0.0
  %v1929 = vmin.f32 %v1823, 0.0
  %v1930 = vmin.f32 %v1828, 0.0
  %v1931 = vmin.f32 %v1833, 0.0
  %v1932 = vmin.f32 %v1838, 0.0
  %v1933 = vmin.f32 %v1843, 0.0
  %v1934 = vmin.f32 %v1848, 0.0
  %v1935 = vmin.f32 %v1853, 0.0
  %v1936 = vmin.f32 %v1858, 0.0
  %v1937 = vmin.f32 %v1863, 0.0
  %v1938 = vmin.f32 %v1868, 0.0
  %v1939 = vmin.f32 %v1873, 0.0
  %v1940 = vmin.f32 %v1878, 0.0
  %v1941 = vmin.f32 %v1883, 0.0
  %v1942 = vmin.f32 %v1888, 0.0
  %v1943 = vmin.f32 %v1893, 0.0
  %v1944 = vmin.f32 %v1898, 0.0
  %v1945 = vmin.f32 %v1903, 0.0
  %v1946 = vmin.f32 %v1908, 0.0
  %v1947 = vmin.f32 %v1913, 0.0
  %vm1948 = vcmp.gt.f32.partialorder %v1758, 0.0
  %vm1949 = vcmp.gt.f32.partialorder %v1763, 0.0
  %vm1950 = vcmp.gt.f32.partialorder %v1768, 0.0
  %vm1951 = vcmp.gt.f32.partialorder %v1773, 0.0
  %vm1952 = vcmp.gt.f32.partialorder %v1778, 0.0
  %vm1953 = vcmp.gt.f32.partialorder %v1783, 0.0
  %vm1954 = vcmp.gt.f32.partialorder %v1788, 0.0
  %vm1955 = vcmp.gt.f32.partialorder %v1793, 0.0
  %vm1956 = vcmp.gt.f32.partialorder %v1798, 0.0
  %vm1957 = vcmp.gt.f32.partialorder %v1803, 0.0
  %vm1958 = vcmp.gt.f32.partialorder %v1808, 0.0
  %vm1959 = vcmp.gt.f32.partialorder %v1813, 0.0
  %vm1960 = vcmp.gt.f32.partialorder %v1818, 0.0
  %vm1961 = vcmp.gt.f32.partialorder %v1823, 0.0
  %vm1962 = vcmp.gt.f32.partialorder %v1828, 0.0
  %vm1963 = vcmp.gt.f32.partialorder %v1833, 0.0
  %vm1964 = vcmp.gt.f32.partialorder %v1838, 0.0
  %vm1965 = vcmp.gt.f32.partialorder %v1843, 0.0
  %vm1966 = vcmp.gt.f32.partialorder %v1848, 0.0
  %vm1967 = vcmp.gt.f32.partialorder %v1853, 0.0
  %vm1968 = vcmp.gt.f32.partialorder %v1858, 0.0
  %vm1969 = vcmp.gt.f32.partialorder %v1863, 0.0
  %vm1970 = vcmp.gt.f32.partialorder %v1868, 0.0
  %vm1971 = vcmp.gt.f32.partialorder %v1873, 0.0
  %vm1972 = vcmp.gt.f32.partialorder %v1878, 0.0
  %vm1973 = vcmp.gt.f32.partialorder %v1883, 0.0
  %vm1974 = vcmp.gt.f32.partialorder %v1888, 0.0
  %vm1975 = vcmp.gt.f32.partialorder %v1893, 0.0
  %vm1976 = vcmp.gt.f32.partialorder %v1898, 0.0
  %vm1977 = vcmp.gt.f32.partialorder %v1903, 0.0
  %vm1978 = vcmp.gt.f32.partialorder %v1908, 0.0
  %vm1979 = vcmp.gt.f32.partialorder %v1913, 0.0
  %v1980 = vmul.f32 %v1916, 1.442695
  %v1981 = vpow.pop %v1980
  %v1982 = vmul.f32 %v1917, 1.442695
  %v1983 = vpow.pop %v1982
  %v1984 = vmul.f32 %v1918, 1.442695
  %v1985 = vpow.pop %v1984
  %v1986 = vmul.f32 %v1919, 1.442695
  %v1987 = vpow.pop %v1986
  %v1988 = vmul.f32 %v1920, 1.442695
  %v1989 = vpow.pop %v1988
  %v1990 = vmul.f32 %v1921, 1.442695
  %v1991 = vpow.pop %v1990
  %v1992 = vmul.f32 %v1922, 1.442695
  %v1993 = vpow.pop %v1992
  %v1994 = vmul.f32 %v1923, 1.442695
  %v1995 = vpow.pop %v1994
  %v1996 = vmul.f32 %v1924, 1.442695
  %v1997 = vpow.pop %v1996
  %v1998 = vmul.f32 %v1925, 1.442695
  %v1999 = vpow.pop %v1998
  %v2000 = vmul.f32 %v1926, 1.442695
  %v2001 = vpow.pop %v2000
  %v2002 = vmul.f32 %v1927, 1.442695
  %v2003 = vpow.pop %v2002
  %v2004 = vmul.f32 %v1928, 1.442695
  %v2005 = vpow.pop %v2004
  %v2006 = vmul.f32 %v1929, 1.442695
  %v2007 = vpow.pop %v2006
  %v2008 = vmul.f32 %v1930, 1.442695
  %v2009 = vpow.pop %v2008
  %v2010 = vmul.f32 %v1931, 1.442695
  %v2011 = vpow.pop %v2010
  %v2012 = vmul.f32 %v1932, 1.442695
  %v2013 = vpow.pop %v2012
  %v2014 = vmul.f32 %v1933, 1.442695
  %v2015 = vpow.pop %v2014
  %v2016 = vmul.f32 %v1934, 1.442695
  %v2017 = vpow.pop %v2016
  %v2018 = vmul.f32 %v1935, 1.442695
  %v2019 = vpow.pop %v2018
  %v2020 = vmul.f32 %v1936, 1.442695
  %v2021 = vpow.pop %v2020
  %v2022 = vmul.f32 %v1937, 1.442695
  %v2023 = vpow.pop %v2022
  %v2024 = vmul.f32 %v1938, 1.442695
  %v2025 = vpow.pop %v2024
  %v2026 = vmul.f32 %v1939, 1.442695
  %v2027 = vpow.pop %v2026
  %v2028 = vmul.f32 %v1940, 1.442695
  %v2029 = vpow.pop %v2028
  %v2030 = vmul.f32 %v1941, 1.442695
  %v2031 = vpow.pop %v2030
  %v2032 = vmul.f32 %v1942, 1.442695
  %v2033 = vpow.pop %v2032
  %v2034 = vmul.f32 %v1943, 1.442695
  %v2035 = vpow.pop %v2034
  %v2036 = vmul.f32 %v1944, 1.442695
  %v2037 = vpow.pop %v2036
  %v2038 = vmul.f32 %v1945, 1.442695
  %v2039 = vpow.pop %v2038
  %v2040 = vmul.f32 %v1946, 1.442695
  %v2041 = vpow.pop %v2040
  %v2042 = vmul.f32 %v1947, 1.442695
  %v2043 = vpow.pop %v2042
  %v2044 = vsub.f32 %v1981, 1.0
  %v2045 = vsub.f32 %v1983, 1.0
  %v2046 = vsub.f32 %v1985, 1.0
  %v2047 = vsub.f32 %v1987, 1.0
  %v2048 = vsub.f32 %v1989, 1.0
  %v2049 = vsub.f32 %v1991, 1.0
  %v2050 = vsub.f32 %v1993, 1.0
  %v2051 = vsub.f32 %v1995, 1.0
  %v2052 = vsub.f32 %v1997, 1.0
  %v2053 = vsub.f32 %v1999, 1.0
  %v2054 = vsub.f32 %v2001, 1.0
  %v2055 = vsub.f32 %v2003, 1.0
  %v2056 = vsub.f32 %v2005, 1.0
  %v2057 = vsub.f32 %v2007, 1.0
  %v2058 = vsub.f32 %v2009, 1.0
  %v2059 = vsub.f32 %v2011, 1.0
  %v2060 = vsub.f32 %v2013, 1.0
  %v2061 = vsub.f32 %v2015, 1.0
  %v2062 = vsub.f32 %v2017, 1.0
  %v2063 = vsub.f32 %v2019, 1.0
  %v2064 = vsub.f32 %v2021, 1.0
  %v2065 = vsub.f32 %v2023, 1.0
  %v2066 = vsub.f32 %v2025, 1.0
  %v2067 = vsub.f32 %v2027, 1.0
  %v2068 = vsub.f32 %v2029, 1.0
  %v2069 = vsub.f32 %v2031, 1.0
  %v2070 = vsub.f32 %v2033, 1.0
  %v2071 = vsub.f32 %v2035, 1.0
  %v2072 = vsub.f32 %v2037, 1.0
  %v2073 = vsub.f32 %v2039, 1.0
  %v2074 = vsub.f32 %v2041, 1.0
  %v2075 = vsub.f32 %v2043, 1.0
  %v2076 = vsel %vm1948, %v1758, %v2044
  %v2077 = vsel %vm1949, %v1763, %v2045
  %v2078 = vsel %vm1950, %v1768, %v2046
  %v2079 = vsel %vm1951, %v1773, %v2047
  %v2080 = vsel %vm1952, %v1778, %v2048
  %v2081 = vsel %vm1953, %v1783, %v2049
  %v2082 = vsel %vm1954, %v1788, %v2050
  %v2083 = vsel %vm1955, %v1793, %v2051
  %v2084 = vsel %vm1956, %v1798, %v2052
  %v2085 = vsel %vm1957, %v1803, %v2053
  %v2086 = vsel %vm1958, %v1808, %v2054
  %v2087 = vsel %vm1959, %v1813, %v2055
  %v2088 = vsel %vm1960, %v1818, %v2056
  %v2089 = vsel %vm1961, %v1823, %v2057
  %v2090 = vsel %vm1962, %v1828, %v2058
  %v2091 = vsel %vm1963, %v1833, %v2059
  %v2092 = vsel %vm1964, %v1838, %v2060
  %v2093 = vsel %vm1965, %v1843, %v2061
  %v2094 = vsel %vm1966, %v1848, %v2062
  %v2095 = vsel %vm1967, %v1853, %v2063
  %v2096 = vsel %vm1968, %v1858, %v2064
  %v2097 = vsel %vm1969, %v1863, %v2065
  %v2098 = vsel %vm1970, %v1868, %v2066
  %v2099 = vsel %vm1971, %v1873, %v2067
  %v2100 = vsel %vm1972, %v1878, %v2068
  %v2101 = vsel %vm1973, %v1883, %v2069
  %v2102 = vsel %vm1974, %v1888, %v2070
  %v2103 = vsel %vm1975, %v1893, %v2071
  %v2104 = vsel %vm1976, %v1898, %v2072
  %v2105 = vsel %vm1977, %v1903, %v2073
  %v2106 = vsel %vm1978, %v1908, %v2074
  %v2107 = vsel %vm1979, %v1913, %v2075
  %v2108 = vld [vmem:[%s3] sm:$0xff]
  %v2109 = vld [vmem:[%s3 + $0x8] sm:$0xff]
  %v2110 = vld [vmem:[%s3 + $0x10] sm:$0xff]
  %v2111 = vld [vmem:[%s3 + $0x18] sm:$0xff]
  %v2112 = vld [vmem:[%s3 + $0x20] sm:$0xff]
  %v2113 = vld [vmem:[%s3 + $0x28] sm:$0xff]
  %v2114 = vld [vmem:[%s3 + $0x30] sm:$0xff]
  %v2115 = vld [vmem:[%s3 + $0x38] sm:$0xff]
  %s2116 = scalar_lea.vmem %s4, 768
  %v2117 = vld [vmem:[%s2116] sm:$0xff]
  %v2118 = vld [vmem:[%s2116 + $0x8] sm:$0xff]
  %v2119 = vld [vmem:[%s2116 + $0x10] sm:$0xff]
  %v2120 = vld [vmem:[%s2116 + $0x18] sm:$0xff]
  %2122 = vset.pattern.permute.xlu0 0
  %2123 = vperm.xlu0 %2122, %v2117
  %v2124 = vpop.permute.xlu0 %2123
  %2127 = vset.pattern.permute.xlu0 0
  %2128 = vperm.xlu0 %2127, %v2118
  %v2129 = vpop.permute.xlu0 %2128
  %2132 = vset.pattern.permute.xlu0 0
  %2133 = vperm.xlu0 %2132, %v2119
  %v2134 = vpop.permute.xlu0 %2133
  %2137 = vset.pattern.permute.xlu0 0
  %2138 = vperm.xlu0 %2137, %v2120
  %v2139 = vpop.permute.xlu0 %2138
  %2141 = vmatprep.subr.mxu0 0.0
  %2142 = vmatpush1.msra.mxu0 %v2076
  %2143 = vmatprep.subr.mxu0 0.0
  %2144 = vmatpush1.msra.mxu0 %v2077
  %2145 = vmatprep.subr.mxu0 0.0
  %2146 = vmatpush1.msra.mxu0 %v2078
  %2147 = vmatprep.subr.mxu0 0.0
  %2148 = vmatpush1.msra.mxu0 %v2079
  %2149 = vmatprep.subr.mxu0 0.0
  %2150 = vmatpush1.msra.mxu0 %v2080
  %2151 = vmatprep.subr.mxu0 0.0
  %2152 = vmatpush1.msra.mxu0 %v2081
  %2153 = vmatprep.subr.mxu0 0.0
  %2154 = vmatpush1.msra.mxu0 %v2082
  %2155 = vmatprep.subr.mxu0 0.0
  %2156 = vmatpush1.msra.mxu0 %v2083
  %2157 = vmatprep.subr.mxu0 0.0
  %2158 = vmatpush1.msra.mxu0 %v2084
  %2159 = vmatprep.subr.mxu0 0.0
  %2160 = vmatpush1.msra.mxu0 %v2085
  %2161 = vmatprep.subr.mxu0 0.0
  %2162 = vmatpush1.msra.mxu0 %v2086
  %2163 = vmatprep.subr.mxu0 0.0
  %2164 = vmatpush1.msra.mxu0 %v2087
  %2165 = vmatprep.subr.mxu0 0.0
  %2166 = vmatpush1.msra.mxu0 %v2088
  %2167 = vmatprep.subr.mxu0 0.0
  %2168 = vmatpush1.msra.mxu0 %v2089
  %2169 = vmatprep.subr.mxu0 0.0
  %2170 = vmatpush1.msra.mxu0 %v2090
  %2171 = vmatprep.subr.mxu0 0.0
  %2172 = vmatpush1.msra.mxu0 %v2091
  %2173 = vmatprep.subr.mxu0 0.0
  %2174 = vmatpush1.msra.mxu0 %v2092
  %2175 = vmatprep.subr.mxu0 0.0
  %2176 = vmatpush1.msra.mxu0 %v2093
  %2177 = vmatprep.subr.mxu0 0.0
  %2178 = vmatpush1.msra.mxu0 %v2094
  %2179 = vmatprep.subr.mxu0 0.0
  %2180 = vmatpush1.msra.mxu0 %v2095
  %2181 = vmatprep.subr.mxu0 0.0
  %2182 = vmatpush1.msra.mxu0 %v2096
  %2183 = vmatprep.subr.mxu0 0.0
  %2184 = vmatpush1.msra.mxu0 %v2097
  %2185 = vmatprep.subr.mxu0 0.0
  %2186 = vmatpush1.msra.mxu0 %v2098
  %2187 = vmatprep.subr.mxu0 0.0
  %2188 = vmatpush1.msra.mxu0 %v2099
  %2189 = vmatprep.subr.mxu0 0.0
  %2190 = vmatpush1.msra.mxu0 %v2100
  %2191 = vmatprep.subr.mxu0 0.0
  %2192 = vmatpush1.msra.mxu0 %v2101
  %2193 = vmatprep.subr.mxu0 0.0
  %2194 = vmatpush1.msra.mxu0 %v2102
  %2195 = vmatprep.subr.mxu0 0.0
  %2196 = vmatpush1.msra.mxu0 %v2103
  %2197 = vmatprep.subr.mxu0 0.0
  %2198 = vmatpush1.msra.mxu0 %v2104
  %2199 = vmatprep.subr.mxu0 0.0
  %2200 = vmatpush1.msra.mxu0 %v2105
  %2201 = vmatprep.subr.mxu0 0.0
  %2202 = vmatpush1.msra.mxu0 %v2106
  %2203 = vmatprep.subr.mxu0 0.0
  %2204 = vmatpush1.msra.mxu0 %v2107
  %2205 = vmatprep.mubr.f32.mxu0 %v2109
  %2206 = vmatmul.mubr.f32.gmra.mrb[0].mxu0 %v2108
  %v2207 = vpop.f32.mrb[0].mxu0
  %v2208 = vadd.f32 %v2124, %v2207
  %v2209 = vpop.f32.mrb[0].mxu0
  %2210 = vmatprep.mubr.f32.mxu0 %v2111
  %2211 = vmatmul.mubr.f32.gmra.mrb[0].mxu0 %v2110
  %v2212 = vpop.f32.mrb[0].mxu0
  %v2213 = vadd.f32 %v2129, %v2212
  %v2214 = vpop.f32.mrb[0].mxu0
  %2215 = vmatprep.mubr.f32.mxu0 %v2113
  %2216 = vmatmul.mubr.f32.gmra.mrb[0].mxu0 %v2112
  %v2217 = vpop.f32.mrb[0].mxu0
  %v2218 = vadd.f32 %v2134, %v2217
  %v2219 = vpop.f32.mrb[0].mxu0
  %2220 = vmatprep.mubr.f32.mxu0 %v2115
  %2221 = vmatmul.mubr.f32.gmra.mrb[0].mxu0 %v2114
  %v2222 = vpop.f32.mrb[0].mxu0
  %v2223 = vadd.f32 %v2139, %v2222
  %v2224 = vpop.f32.mrb[0].mxu0
  %2225 = vdwg.mxu0
  %vm2226 = vcmask 130048
  %2227 = vst.msk [vmem:[%s5] sm:$0xff] %vm2226, %v2208
  %2228 = vst.msk [vmem:[%s5 + $0x8] sm:$0xff] %vm2226, %v2213
  %2229 = vst.msk [vmem:[%s5 + $0x10] sm:$0xff] %vm2226, %v2218
  %2230 = vst.msk [vmem:[%s5 + $0x18] sm:$0xff] %vm2226, %v2223
  // Predicated region
  $region22: #{tpu_custom_call.1} parent=0 // pred_check
    _
  $region23: #{tpu_custom_call.1} parent=0 // pred_check_branch
    %2232 = sbr.rel (0) target = $region25
  $region24: #{tpu_custom_call.1} parent=0 // pred_region
    _
  $region25: #{tpu_custom_call.1} parent=0 // pred_fallthru
    _
  // Predicated region
  $region26: #{tpu_custom_call.1} parent=0 // pred_check
    _
  $region27: #{tpu_custom_call.1} parent=0 // pred_check_branch
    %2234 = sbr.rel (0) target = $region29
  $region28: #{tpu_custom_call.1} parent=0 // pred_region
    _
  $region29: #{tpu_custom_call.1} parent=0 // pred_fallthru
    _

</llo_original>
